<compile_context>
chip_gen: v7x
topology: tpu7x:2x2x1
jax: 0.10.0
libtpu: 0.0.40
codegen_flags: <defaults>
</compile_context>

<pallas_src>
import functools
import math

import jax
import jax.numpy as jnp
from jax import lax
from jax.experimental import pallas as pl
from jax.experimental.pallas import tpu as pltpu

_BIG = 1e30  # finite sentinel for masked min/max (avoids inf arithmetic)


def _semi_hard_triplet_kernel(pos_any_ref, lab_smem_ref,          # scalar prefetch (SMEM)
                              emb_t_ref, emb_all_ref,             # VMEM inputs
                              sq_t_ref, sq_row_ref,
                              lab_t_ref, lab_row_ref, valid_ref,
                              loss_ref,                           # output
                              acc_ref,                            # VMEM scratch (T,1)
                              *, margin):
    T = emb_t_ref.shape[0]
    Bp = emb_all_ref.shape[0]
    g = pl.program_id(0)
    BIG = jnp.float32(_BIG)

    e_t = emb_t_ref[...].astype(jnp.float32)      # (T, D)   rows of this tile
    e_a = emb_all_ref[...].astype(jnp.float32)    # (Bp, D)  all embeddings (resident)

    # ---- pairwise distances for this row tile (matches _pairwise_distances) ----
    # Gram strip on the MXU, contracting on D so no explicit (D, Bp) transpose.
    dot = lax.dot_general(e_t, e_a, (((1,), (1,)), ((), ())),
                          preferred_element_type=jnp.float32)      # (T, Bp)
    sq_t = sq_t_ref[...]          # (T, 1)  squared norms, hoisted to wrapper
    sq_a = sq_row_ref[...]        # (1, Bp) squared norms, hoisted to wrapper

    dist = sq_a - 2.0 * dot + sq_t
    dist = jnp.maximum(dist, 0.0)
    dist = jnp.where(dist > 0.0, jnp.sqrt(dist), 0.0)              # (T, Bp)

    # ---- label adjacency / validity masks (computed once per tile) ----------
    lab_t = lab_t_ref[...]                       # (T, 1) int32
    lab_r = lab_row_ref[...]                     # (1, Bp) int32
    valid = valid_ref[...] > 0.5                 # (1, Bp) bool (real vs padded col)

    adj = lab_t == lab_r                                             # (T, Bp)
    adjn_valid = jnp.logical_and(jnp.logical_not(adj), valid)        # valid negatives

    col_row = lax.broadcasted_iota(jnp.int32, (1, Bp), 1)            # (1, Bp) col idx
    row_gid = g * T + lax.broadcasted_iota(jnp.int32, (T, 1), 0)     # (T, 1) global row

    # ---- negatives_inside: hardest valid negative per row (torch fallback) ---
    neg_in = jnp.max(jnp.where(adjn_valid, dist, -BIG), axis=1, keepdims=True)
    has_neg = neg_in > (-0.5 * BIG)
    axis_min = jnp.min(jnp.where(valid, dist, BIG), axis=1, keepdims=True)
    neg_inside = jnp.where(has_neg, neg_in, axis_min)                # (T, 1)

    acc_ref[...] = jnp.zeros_like(acc_ref)

    # ---- semi-hard mining: loop over j columns, 2-D work, k on lanes ---------
    @pl.loop(0, Bp)
    def _(j):
        # Skip columns that are not a positive for any row of this tile: their
        # contribution to the loss is exactly zero (lossless skip).
        @pl.when(pos_any_ref[g, j] > 0)
        def _():
            lab_j = lab_smem_ref[j]                                  # scalar label
            # positives mask for this column via scalar compares (no lane reduce)
            is_pos = jnp.logical_and(lab_t == lab_j, row_gid != j)   # (T, 1)

            # thr = dist[:, j], extracted exactly from the same matrix used in
            # the strict comparison below (one-hot masked lane max).
            thr = jnp.max(jnp.where(col_row == j, dist, -BIG),
                          axis=1, keepdims=True)                     # (T, 1)

            m = jnp.logical_and(adjn_valid, dist > thr)              # (T, Bp)
            neg_out = jnp.min(jnp.where(m, dist, BIG), axis=1, keepdims=True)
            semi = jnp.where(neg_out < 0.5 * BIG, neg_out, neg_inside)

            contrib = jnp.where(is_pos,
                                jnp.maximum(thr - semi + margin, 0.0), 0.0)
            acc_ref[...] += contrib

    loss_ref[...] = jnp.reshape(jnp.sum(acc_ref[...]), (1, 1, 1))


def batch_semi_hard_triplet_loss(labels, embeddings, margin=1.0, tile_i=128):
    """labels: (B,) int, embeddings: (B, D) float32 -> scalar float32."""
    T = int(tile_i)
    assert T % 8 == 0
    B, D = embeddings.shape

    # Pad the batch to a multiple of lcm(T, 128): row tiles of T rows AND a
    # lane-dense column axis.
    L = (T * 128) // math.gcd(T, 128)
    Bp = ((B + L - 1) // L) * L
    pad = Bp - B
    G = Bp // T

    emb = embeddings.astype(jnp.float32)
    lab = labels.astype(jnp.int32)
    if pad:
        emb = jnp.pad(emb, ((0, pad), (0, 0)))
        # Unique sentinel labels for padded rows -> they never form positive pairs.
        pad_lab = jnp.min(lab) - 1 - jnp.arange(1, pad + 1, dtype=jnp.int32)
        lab = jnp.concatenate([lab, pad_lab])
        valid = jnp.concatenate([jnp.ones((B,), jnp.float32),
                                 jnp.zeros((pad,), jnp.float32)])
    else:
        valid = jnp.ones((B,), jnp.float32)

    # Hoisted global squared norms (computed once, not per grid step).
    sq = jnp.sum(emb * emb, axis=1)
    sq_col = sq.reshape(Bp, 1)
    sq_row = sq.reshape(1, Bp)

    lab_col = lab.reshape(Bp, 1)
    lab_row = lab.reshape(1, Bp)
    valid_row = valid.reshape(1, Bp)

    # Per-(tile, column) positive indicator + positive-pair count: pure label math
    # done once in the wrapper (drives the lossless pl.when skip in the kernel).
    valid_b = valid > 0.5
    adj_full = lab[:, None] == lab[None, :]
    not_self = ~jnp.eye(Bp, dtype=bool)
    pos_full = adj_full & not_self & valid_b[:, None] & valid_b[None, :]
    pos_any = pos_full.reshape(G, T, Bp).any(axis=1).astype(jnp.int32)  # (G, Bp)
    num_pos = jnp.sum(pos_full.astype(jnp.float32))

    # VMEM budget: double-buffered input blocks + ~10 live (T, Bp) f32 tiles.
    est = 4 * (2 * T * D + 2 * Bp * D + 10 * T * Bp + 10 * Bp + 8 * T) + (1 << 20)
    vmem_limit = int(min(max(est, 16 * 1024 * 1024), 48 * 1024 * 1024))

    kernel = functools.partial(_semi_hard_triplet_kernel, margin=float(margin))

    grid_spec = pltpu.PrefetchScalarGridSpec(
        num_scalar_prefetch=2,           # pos_any (G,Bp) i32, labels (Bp,) i32 -> SMEM
        grid=(G,),
        in_specs=[
            pl.BlockSpec((T, D), lambda i, pa, lb: (i, 0)),    # embedding row tile
            pl.BlockSpec((Bp, D), lambda i, pa, lb: (0, 0)),   # all embeddings (resident)
            pl.BlockSpec((T, 1), lambda i, pa, lb: (i, 0)),    # squared norms (tile col)
            pl.BlockSpec((1, Bp), lambda i, pa, lb: (0, 0)),   # squared norms (full row)
            pl.BlockSpec((T, 1), lambda i, pa, lb: (i, 0)),    # labels column (tile)
            pl.BlockSpec((1, Bp), lambda i, pa, lb: (0, 0)),   # labels row (full)
            pl.BlockSpec((1, Bp), lambda i, pa, lb: (0, 0)),   # validity row (full)
        ],
        out_specs=pl.BlockSpec((1, 1, 1), lambda i, pa, lb: (i, 0, 0)),  # per-tile loss
        scratch_shapes=[pltpu.VMEM((T, 1), jnp.float32)],
    )

    loss_parts = pl.pallas_call(
        kernel,
        grid_spec=grid_spec,
        out_shape=jax.ShapeDtypeStruct((G, 1, 1), jnp.float32),
        compiler_params=pltpu.CompilerParams(
            dimension_semantics=("parallel",),
            vmem_limit_bytes=vmem_limit),
    )(pos_any, lab, emb, emb, sq_col, sq_row, lab_col, lab_row, valid_row)

    total_loss = jnp.sum(loss_parts)
    # Guarded division (0 positives -> 0 instead of NaN; identical otherwise).
    return total_loss / jnp.maximum(num_pos, 1.0)


# ----------------------------- pure-JAX reference ----------------------------
def _reference_loss(labels, embeddings, margin=1.0):
    B = embeddings.shape[0]
    dot = embeddings @ embeddings.T
    sq = jnp.diag(dot)
    dist = sq[None, :] - 2.0 * dot + sq[:, None]
    dist = jnp.maximum(dist, 0.0)
    zm = (dist == 0.0).astype(jnp.float32)
    dist = (1.0 - zm) * jnp.sqrt(dist + zm * 1e-16)

    adjacency = labels[:, None] == labels[None, :]
    adjacency_not = ~adjacency

    pd_ik = dist[:, None, :]
    pd_ij = dist[:, :, None]
    mask3 = adjacency_not[:, None, :] & (pd_ik > pd_ij)
    mask3_f = mask3.astype(jnp.float32)

    axis_max = jnp.max(dist, axis=1, keepdims=True)
    neg_out = jnp.min((pd_ik - axis_max[:, :, None]) * mask3_f, axis=2) + axis_max
    mask_final = jnp.sum(mask3_f, axis=2) > 0.0

    axis_min = jnp.min(dist, axis=1, keepdims=True)
    neg_in = jnp.max((dist - axis_min) * adjacency_not.astype(jnp.float32),
                     axis=1, keepdims=True) + axis_min

    semi_hard = jnp.where(mask_final, neg_out, neg_in)
    loss_mat = dist - semi_hard + margin
    mask_pos = adjacency.astype(jnp.float32) - jnp.eye(B)
    return jnp.sum(jnp.maximum(loss_mat * mask_pos, 0.0)) / jnp.sum(mask_pos)


if __name__ == "__main__":
    key = jax.random.PRNGKey(0)

    # --- test 1: small batch, single row tile (default tile_i=128) ------------
    B, H, D = 8, 32, 32
    k_feat, k_w, k2_feat, k2_w = jax.random.split(key, 4)
    features = jax.random.normal(k_feat, (B, H), dtype=jnp.float32)
    W = jax.random.normal(k_w, (H, D), dtype=jnp.float32) * 0.1
    embeddings = features @ W                        # (B, D) sentence embeddings
    labels = jnp.array([0, 0, 1, 1, 2, 2, 0, 1], dtype=jnp.int32)

    loss = batch_semi_hard_triplet_loss(labels, embeddings, margin=1.0)
    loss = jax.block_until_ready(loss)
    ref = _reference_loss(labels, embeddings, margin=1.0)
    assert jnp.allclose(loss, ref, rtol=1e-4, atol=1e-5), (loss, ref)

    # --- test 2: multi-tile grid (tile_i=8 -> G=16), exercises the skip path --
    B2, H2, D2 = 24, 32, 64
    features2 = jax.random.normal(k2_feat, (B2, H2), dtype=jnp.float32)
    W2 = jax.random.normal(k2_w, (H2, D2), dtype=jnp.float32) * 0.1
    embeddings2 = features2 @ W2
    labels2 = (jnp.arange(B2) % 5).astype(jnp.int32)

    loss2 = batch_semi_hard_triplet_loss(labels2, embeddings2, margin=1.0, tile_i=8)
    loss2 = jax.block_until_ready(loss2)
    ref2 = _reference_loss(labels2, embeddings2, margin=1.0)
    assert jnp.allclose(loss2, ref2, rtol=1e-4, atol=1e-5), (loss2, ref2)

    print("KERNEL_OK")
</pallas_src>

<mosaic_0001>
module attributes {stable_mosaic.version = 11 : i64} {
  func.func @_semi_hard_triplet_kernel(%arg0: i32, %arg1: memref<1x128xi32, #tpu.memory_space<smem>>, %arg2: memref<128xi32, #tpu.memory_space<smem>>, %arg3: memref<128x32xf32, #tpu.memory_space<vmem>>, %arg4: memref<128x32xf32, #tpu.memory_space<vmem>>, %arg5: memref<128x1xf32, #tpu.memory_space<vmem>>, %arg6: memref<1x128xf32, #tpu.memory_space<vmem>>, %arg7: memref<128x1xi32, #tpu.memory_space<vmem>>, %arg8: memref<1x128xi32, #tpu.memory_space<vmem>>, %arg9: memref<1x128xf32, #tpu.memory_space<vmem>>, %arg10: memref<1x1x1xf32, #tpu.memory_space<vmem>>, %arg11: memref<128x1xf32, #tpu.memory_space<vmem>>) attributes {dimension_semantics = [#tpu.dimension_semantics<parallel>], iteration_bounds = array<i64: 1>, scalar_prefetch = 2 : i64, scratch_operands = 1 : i64, tpu.core_type = #tpu.core_type<tc>, window_params = [{transform_indices = @transform_0, window_bounds = array<i64: 128, 32>}, {pipeline_mode = #tpu.pipeline_mode<synchronous>, transform_indices = @transform_1, window_bounds = array<i64: 128, 32>}, {transform_indices = @transform_2, window_bounds = array<i64: 128, 1>}, {pipeline_mode = #tpu.pipeline_mode<synchronous>, transform_indices = @transform_3, window_bounds = array<i64: 1, 128>}, {transform_indices = @transform_4, window_bounds = array<i64: 128, 1>}, {pipeline_mode = #tpu.pipeline_mode<synchronous>, transform_indices = @transform_5, window_bounds = array<i64: 1, 128>}, {pipeline_mode = #tpu.pipeline_mode<synchronous>, transform_indices = @transform_6, window_bounds = array<i64: 1, 128>}, {transform_indices = @transform_7, window_bounds = array<i64: 1, 1, 1>}]} {
    %c0 = arith.constant 0 : index
    %c0_0 = arith.constant 0 : index
    %0 = vector.load %arg3[%c0, %c0_0] : memref<128x32xf32, #tpu.memory_space<vmem>>, vector<128x32xf32>
    %c0_1 = arith.constant 0 : index
    %c0_2 = arith.constant 0 : index
    %1 = vector.load %arg4[%c0_1, %c0_2] : memref<128x32xf32, #tpu.memory_space<vmem>>, vector<128x32xf32>
    %cst = arith.constant dense<0.000000e+00> : vector<128x128xf32>
    %2 = tpu.matmul %0, %1, %cst {dimension_numbers = #tpu.dot_dimension_numbers<[1], [1], [0], [0], [0, 0, 1, 0], [], []>} : vector<128x32xf32>, vector<128x32xf32>, vector<128x128xf32> -> vector<128x128xf32>
    %c0_3 = arith.constant 0 : index
    %c0_4 = arith.constant 0 : index
    %3 = vector.load %arg5[%c0_3, %c0_4] : memref<128x1xf32, #tpu.memory_space<vmem>>, vector<128x1xf32>
    %c0_5 = arith.constant 0 : index
    %c0_6 = arith.constant 0 : index
    %4 = vector.load %arg6[%c0_5, %c0_6] : memref<1x128xf32, #tpu.memory_space<vmem>>, vector<1x128xf32>
    %cst_7 = arith.constant 2.000000e+00 : f32
    %5 = vector.broadcast %cst_7 : f32 to vector<128x128xf32>
    %6 = arith.mulf %5, %2 : vector<128x128xf32>
    %7 = vector.broadcast %4 : vector<1x128xf32> to vector<128x128xf32>
    %8 = arith.subf %7, %6 : vector<128x128xf32>
    %9 = vector.broadcast %3 : vector<128x1xf32> to vector<128x128xf32>
    %10 = arith.addf %8, %9 : vector<128x128xf32>
    %cst_8 = arith.constant 0.000000e+00 : f32
    %11 = vector.broadcast %cst_8 : f32 to vector<128x128xf32>
    %12 = arith.maximumf %10, %11 : vector<128x128xf32>
    %cst_9 = arith.constant 0.000000e+00 : f32
    %13 = vector.broadcast %cst_9 : f32 to vector<128x128xf32>
    %14 = arith.cmpf ogt, %12, %13 : vector<128x128xf32>
    %15 = math.sqrt %12 : vector<128x128xf32>
    %cst_10 = arith.constant 0.000000e+00 : f32
    %16 = vector.broadcast %cst_10 : f32 to vector<128x128xf32>
    %17 = arith.select %14, %15, %16 : vector<128x128xi1>, vector<128x128xf32>
    %c0_11 = arith.constant 0 : index
    %c0_12 = arith.constant 0 : index
    %18 = vector.load %arg7[%c0_11, %c0_12] : memref<128x1xi32, #tpu.memory_space<vmem>>, vector<128x1xi32>
    %c0_13 = arith.constant 0 : index
    %c0_14 = arith.constant 0 : index
    %19 = vector.load %arg8[%c0_13, %c0_14] : memref<1x128xi32, #tpu.memory_space<vmem>>, vector<1x128xi32>
    %c0_15 = arith.constant 0 : index
    %c0_16 = arith.constant 0 : index
    %20 = vector.load %arg9[%c0_15, %c0_16] : memref<1x128xf32, #tpu.memory_space<vmem>>, vector<1x128xf32>
    %cst_17 = arith.constant 5.000000e-01 : f32
    %21 = vector.broadcast %cst_17 : f32 to vector<1x128xf32>
    %22 = arith.cmpf ogt, %20, %21 : vector<1x128xf32>
    %23 = vector.broadcast %18 : vector<128x1xi32> to vector<128x128xi32>
    %24 = vector.broadcast %19 : vector<1x128xi32> to vector<128x128xi32>
    %25 = arith.cmpi eq, %23, %24 : vector<128x128xi32>
    %cst_18 = arith.constant dense<true> : vector<128x128xi1>
    %26 = arith.xori %25, %cst_18 : vector<128x128xi1>
    %27 = vector.broadcast %22 : vector<1x128xi1> to vector<128x128xi1>
    %28 = arith.andi %26, %27 : vector<128x128xi1>
    %29 = tpu.iota {dimensions = array<i32: 1>} : vector<1x128xi32>
    %c128_i32 = arith.constant 128 : i32
    %30 = arith.muli %arg0, %c128_i32 : i32
    %31 = tpu.iota {dimensions = array<i32: 0>} : vector<128x1xi32>
    %32 = vector.broadcast %30 : i32 to vector<128x1xi32>
    %33 = arith.addi %32, %31 : vector<128x1xi32>
    %cst_19 = arith.constant 0.000000e+00 : f32
    %cst_20 = arith.constant 1.000000e+30 : f32
    %34 = arith.subf %cst_19, %cst_20 : f32
    %35 = vector.broadcast %34 : f32 to vector<128x128xf32>
    %36 = arith.select %28, %17, %35 : vector<128x128xi1>, vector<128x128xf32>
    %cst_21 = arith.constant dense<0xFF800000> : vector<128xf32>
    %37 = vector.multi_reduction <maximumf>, %36, %cst_21 [1] : vector<128x128xf32> to vector<128xf32>
    %38 = vector.shape_cast %37 : vector<128xf32> to vector<128x1xf32>
    %cst_22 = arith.constant -5.000000e-01 : f32
    %cst_23 = arith.constant 1.000000e+30 : f32
    %39 = arith.mulf %cst_22, %cst_23 : f32
    %40 = vector.broadcast %39 : f32 to vector<128x1xf32>
    %41 = arith.cmpf ogt, %38, %40 : vector<128x1xf32>
    %cst_24 = arith.constant 1.000000e+30 : f32
    %42 = vector.shape_cast %22 : vector<1x128xi1> to vector<1x128xi1>
    %43 = vector.broadcast %42 : vector<1x128xi1> to vector<128x128xi1>
    %44 = vector.broadcast %cst_24 : f32 to vector<128x128xf32>
    %45 = arith.select %43, %17, %44 : vector<128x128xi1>, vector<128x128xf32>
    %cst_25 = arith.constant dense<0x7F800000> : vector<128xf32>
    %46 = vector.multi_reduction <minimumf>, %45, %cst_25 [1] : vector<128x128xf32> to vector<128xf32>
    %47 = vector.shape_cast %46 : vector<128xf32> to vector<128x1xf32>
    %48 = arith.select %41, %38, %47 : vector<128x1xi1>, vector<128x1xf32>
    %cst_26 = arith.constant 0.000000e+00 : f32
    %49 = vector.broadcast %cst_26 : f32 to vector<128x1xf32>
    %c0_27 = arith.constant 0 : index
    %c0_28 = arith.constant 0 : index
    %50 = vector.load %arg11[%c0_27, %c0_28] : memref<128x1xf32, #tpu.memory_space<vmem>>, vector<128x1xf32>
    tpu.vector_store %arg11[%c0_27, %c0_28], %49 {strides = array<i32>} : memref<128x1xf32, #tpu.memory_space<vmem>>, vector<128x1xf32>,
    %cst_29 = arith.constant 1.000000e+30 : f32
    %c0_i32 = arith.constant 0 : i32
    %c128_i32_30 = arith.constant 128 : i32
    %51 = arith.addi %c0_i32, %c128_i32_30 : i32
    %c1_i32 = arith.constant 1 : i32
    scf.for %arg12 = %c0_i32 to %51 step %c1_i32  : i32 {
      %c1_i32_38 = arith.constant 1 : i32
      %59 = arith.muli %arg12, %c1_i32_38 : i32
      %c0_i32_39 = arith.constant 0 : i32
      %60 = arith.addi %c0_i32_39, %59 : i32
      %61 = arith.index_cast %arg0 : i32 to index
      %62 = arith.index_cast %60 : i32 to index
      %63 = memref.load %arg1[%61, %62] : memref<1x128xi32, #tpu.memory_space<smem>>
      %c0_i32_40 = arith.constant 0 : i32
      %64 = arith.cmpi sgt, %63, %c0_i32_40 : i32
      %65 = arith.extui %64 : i1 to i32
      %c0_i32_41 = arith.constant 0 : i32
      %66 = arith.cmpi ne, %65, %c0_i32_41 : i32
      scf.if %66 {
        %67 = arith.index_cast %60 : i32 to index
        %68 = memref.load %arg2[%67] : memref<128xi32, #tpu.memory_space<smem>>
        %69 = vector.broadcast %68 : i32 to vector<128x1xi32>
        %70 = arith.cmpi eq, %18, %69 : vector<128x1xi32>
        %71 = vector.broadcast %60 : i32 to vector<128x1xi32>
        %72 = arith.cmpi ne, %33, %71 : vector<128x1xi32>
        %73 = arith.andi %70, %72 : vector<128x1xi1>
        %74 = vector.broadcast %60 : i32 to vector<1x128xi32>
        %75 = arith.cmpi eq, %29, %74 : vector<1x128xi32>
        %cst_42 = arith.constant 0.000000e+00 : f32
        %76 = arith.subf %cst_42, %cst_29 : f32
        %77 = vector.shape_cast %75 : vector<1x128xi1> to vector<1x128xi1>
        %78 = vector.broadcast %77 : vector<1x128xi1> to vector<128x128xi1>
        %79 = vector.broadcast %76 : f32 to vector<128x128xf32>
        %80 = arith.select %78, %17, %79 : vector<128x128xi1>, vector<128x128xf32>
        %cst_43 = arith.constant dense<0xFF800000> : vector<128xf32>
        %81 = vector.multi_reduction <maximumf>, %80, %cst_43 [1] : vector<128x128xf32> to vector<128xf32>
        %82 = vector.shape_cast %81 : vector<128xf32> to vector<128x1xf32>
        %83 = vector.broadcast %82 : vector<128x1xf32> to vector<128x128xf32>
        %84 = arith.cmpf ogt, %17, %83 : vector<128x128xf32>
        %85 = arith.andi %28, %84 : vector<128x128xi1>
        %86 = vector.broadcast %cst_29 : f32 to vector<128x128xf32>
        %87 = arith.select %85, %17, %86 : vector<128x128xi1>, vector<128x128xf32>
        %cst_44 = arith.constant dense<0x7F800000> : vector<128xf32>
        %88 = vector.multi_reduction <minimumf>, %87, %cst_44 [1] : vector<128x128xf32> to vector<128xf32>
        %89 = vector.shape_cast %88 : vector<128xf32> to vector<128x1xf32>
        %cst_45 = arith.constant 5.000000e-01 : f32
        %90 = arith.mulf %cst_45, %cst_29 : f32
        %91 = vector.broadcast %90 : f32 to vector<128x1xf32>
        %92 = arith.cmpf olt, %89, %91 : vector<128x1xf32>
        %93 = arith.select %92, %89, %48 : vector<128x1xi1>, vector<128x1xf32>
        %94 = arith.subf %82, %93 : vector<128x1xf32>
        %cst_46 = arith.constant 1.000000e+00 : f32
        %95 = vector.broadcast %cst_46 : f32 to vector<128x1xf32>
        %96 = arith.addf %94, %95 : vector<128x1xf32>
        %cst_47 = arith.constant 0.000000e+00 : f32
        %97 = vector.broadcast %cst_47 : f32 to vector<128x1xf32>
        %98 = arith.maximumf %96, %97 : vector<128x1xf32>
        %cst_48 = arith.constant 0.000000e+00 : f32
        %99 = vector.broadcast %cst_48 : f32 to vector<128x1xf32>
        %100 = arith.select %73, %98, %99 : vector<128x1xi1>, vector<128x1xf32>
        %c0_49 = arith.constant 0 : index
        %c0_50 = arith.constant 0 : index
        %101 = vector.load %arg11[%c0_49, %c0_50] : memref<128x1xf32, #tpu.memory_space<vmem>>, vector<128x1xf32>
        %102 = arith.addf %101, %100 : vector<128x1xf32>
        %c0_51 = arith.constant 0 : index
        %c0_52 = arith.constant 0 : index
        %103 = vector.load %arg11[%c0_51, %c0_52] : memref<128x1xf32, #tpu.memory_space<vmem>>, vector<128x1xf32>
        tpu.vector_store %arg11[%c0_51, %c0_52], %102 {strides = array<i32>} : memref<128x1xf32, #tpu.memory_space<vmem>>, vector<128x1xf32>,
      } else {
      }
    }
    %c128_i32_31 = arith.constant 128 : i32
    %c0_32 = arith.constant 0 : index
    %c0_33 = arith.constant 0 : index
    %52 = vector.load %arg11[%c0_32, %c0_33] : memref<128x1xf32, #tpu.memory_space<vmem>>, vector<128x1xf32>
    %53 = vector.shape_cast %52 : vector<128x1xf32> to vector<1x128x1xf32>
    %cst_34 = arith.constant dense<0.000000e+00> : vector<1xf32>
    %54 = vector.multi_reduction <add>, %53, %cst_34 [1, 2] : vector<1x128x1xf32> to vector<1xf32>
    %55 = vector.shape_cast %54 : vector<1xf32> to vector<1x1x1xf32>
    %56 = vector.extract %55[0, 0, 0] : f32 from vector<1x1x1xf32>
    %57 = vector.broadcast %56 : f32 to vector<1x1x1xf32>
    %c0_35 = arith.constant 0 : index
    %c0_36 = arith.constant 0 : index
    %c0_37 = arith.constant 0 : index
    %58 = vector.load %arg10[%c0_35, %c0_36, %c0_37] : memref<1x1x1xf32, #tpu.memory_space<vmem>>, vector<1x1x1xf32>
    tpu.vector_store %arg10[%c0_35, %c0_36, %c0_37], %57 {strides = array<i32>} : memref<1x1x1xf32, #tpu.memory_space<vmem>>, vector<1x1x1xf32>,
    return
  }
  func.func @transform_0(%arg0: i32, %arg1: memref<1x128xi32, #tpu.memory_space<smem>>, %arg2: memref<128xi32, #tpu.memory_space<smem>>) -> (i32, i32) {
    %c0_i32 = arith.constant 0 : i32
    %c0_i32_0 = arith.constant 0 : i32
    return %arg0, %c0_i32 : i32, i32
  }
  func.func @transform_1(%arg0: i32, %arg1: memref<1x128xi32, #tpu.memory_space<smem>>, %arg2: memref<128xi32, #tpu.memory_space<smem>>) -> (i32, i32) {
    %c0_i32 = arith.constant 0 : i32
    %c0_i32_0 = arith.constant 0 : i32
    %c0_i32_1 = arith.constant 0 : i32
    return %c0_i32, %c0_i32_0 : i32, i32
  }
  func.func @transform_2(%arg0: i32, %arg1: memref<1x128xi32, #tpu.memory_space<smem>>, %arg2: memref<128xi32, #tpu.memory_space<smem>>) -> (i32, i32) {
    %c0_i32 = arith.constant 0 : i32
    %c0_i32_0 = arith.constant 0 : i32
    return %arg0, %c0_i32 : i32, i32
  }
  func.func @transform_3(%arg0: i32, %arg1: memref<1x128xi32, #tpu.memory_space<smem>>, %arg2: memref<128xi32, #tpu.memory_space<smem>>) -> (i32, i32) {
    %c0_i32 = arith.constant 0 : i32
    %c0_i32_0 = arith.constant 0 : i32
    %c0_i32_1 = arith.constant 0 : i32
    return %c0_i32, %c0_i32_0 : i32, i32
  }
  func.func @transform_4(%arg0: i32, %arg1: memref<1x128xi32, #tpu.memory_space<smem>>, %arg2: memref<128xi32, #tpu.memory_space<smem>>) -> (i32, i32) {
    %c0_i32 = arith.constant 0 : i32
    %c0_i32_0 = arith.constant 0 : i32
    return %arg0, %c0_i32 : i32, i32
  }
  func.func @transform_5(%arg0: i32, %arg1: memref<1x128xi32, #tpu.memory_space<smem>>, %arg2: memref<128xi32, #tpu.memory_space<smem>>) -> (i32, i32) {
    %c0_i32 = arith.constant 0 : i32
    %c0_i32_0 = arith.constant 0 : i32
    %c0_i32_1 = arith.constant 0 : i32
    return %c0_i32, %c0_i32_0 : i32, i32
  }
  func.func @transform_6(%arg0: i32, %arg1: memref<1x128xi32, #tpu.memory_space<smem>>, %arg2: memref<128xi32, #tpu.memory_space<smem>>) -> (i32, i32) {
    %c0_i32 = arith.constant 0 : i32
    %c0_i32_0 = arith.constant 0 : i32
    %c0_i32_1 = arith.constant 0 : i32
    return %c0_i32, %c0_i32_0 : i32, i32
  }
  func.func @transform_7(%arg0: i32, %arg1: memref<1x128xi32, #tpu.memory_space<smem>>, %arg2: memref<128xi32, #tpu.memory_space<smem>>) -> (i32, i32, i32) {
    %c0_i32 = arith.constant 0 : i32
    %c0_i32_0 = arith.constant 0 : i32
    %c0_i32_1 = arith.constant 0 : i32
    return %arg0, %c0_i32, %c0_i32_0 : i32, i32, i32
  }
}

</mosaic_0001>

<llo_original>
// kernel: tpu_custom_call.1
$region0: #{tpu_custom_call.1}
  #allocation0 [shape = 'u32[]', space=smem, size = 0x4, offset = 0x4, fixed_abs, tag = 'smem constant byte address 0x4 - core index']
  #allocation1 [shape = 'u32[144,128]{1,0:T(1,128)}', space=vmem, size = 0x12000, scoped, tag = 'internal scratch']
  #allocation2 [shape = 'f32[128,1]{1,0:T(8,128)}', space=vmem, size = 0x10000, scoped, tag = 'scratch operand']
  #allocation3 [shape = 's32[1]{0}', space=sflag, size = 0x4, scoped, tag = 'scoped memory for tpu_custom_call.1']
  #allocation4 [shape = 'u8[512]{0}', space=smem, size = 0x200, scoped, tag = 'prefetched SMEM operand 0']
  #allocation5 [shape = 'u8[512]{0}', space=smem, size = 0x200, scoped, tag = 'prefetched SMEM operand 1']
  %s0 = inlined_call_operand.vmem [shape: s32[1,128], index: 0, kind: input, shape index: {}]
  %s1 = inlined_call_operand.vmem [shape: s32[128], index: 1, kind: input, shape index: {}]
  %s2 = inlined_call_operand.vmem [shape: f32[128,32], index: 2, kind: input, shape index: {}]
  %s3 = inlined_call_operand.vmem [shape: f32[128,32], index: 3, kind: input, shape index: {}]
  %s4 = inlined_call_operand.vmem [shape: f32[128,1], index: 4, kind: input, shape index: {}]
  %s5 = inlined_call_operand.vmem [shape: f32[1,128], index: 5, kind: input, shape index: {}]
  %s6 = inlined_call_operand.vmem [shape: s32[128,1], index: 6, kind: input, shape index: {}]
  %s7 = inlined_call_operand.vmem [shape: s32[1,128], index: 7, kind: input, shape index: {}]
  %s8 = inlined_call_operand.vmem [shape: f32[1,128], index: 8, kind: input, shape index: {}]
  %s9 = inlined_call_operand.hbm [shape: f32[1,1,1], index: 9, kind: output, shape index: {}]
  %s10 = sld [smem:[#allocation0]]
  $region49: #{tpu_custom_call.1} parent=0
    _
  %s12 = ssub.s32 1, %s10
  %s13 = scalar_select 0, %s12, %s10
  %s14 = sshll.u32 %s0, 4
  %s15 = int_to_ptr.vmem [resolvable:$true] %s14
  %17 = dma.vmem_to_smem %s15, 16, [#allocation4], [#allocation3]
  %s18 = sshll.u32 %s1, 4
  %s19 = int_to_ptr.vmem [resolvable:$true] %s18
  %21 = dma.vmem_to_smem %s19, 16, [#allocation5], [#allocation3]
  %22 = dma.done [#allocation3], 32
  %23 = sfence
  $region1: #{tpu_custom_call.1} parent=0
    #allocation6 [shape = 'u8[512]{0}', space=vmem, size = 0x400, scoped, tag = 'output window, operand 0, single buffered']
    #allocation7 [shape = 's32[1]{0}', space=sflag, size = 0x4, scoped, tag = 'scoped memory for tpu_custom_call.1']
    %24 = vsyncpa [#allocation7], 0
    // Predicated region
    $region2: #{tpu_custom_call.1} parent=1 // pred_check
      _
    $region3: #{tpu_custom_call.1} parent=1 // pred_check_branch
      %26 = sbr.rel (0) target = $region5
    $region4: #{tpu_custom_call.1} parent=1 // pred_region
      _
    $region5: #{tpu_custom_call.1} parent=1 // pred_fallthru
      _
    // Predicated region
    $region6: #{tpu_custom_call.1} parent=1 // pred_check
      _
    $region7: #{tpu_custom_call.1} parent=1 // pred_check_branch
      %28 = sbr.rel (0) target = $region9
    $region8: #{tpu_custom_call.1} parent=1 // pred_region
      _
    $region9: #{tpu_custom_call.1} parent=1 // pred_fallthru
      _
    // Predicated region
    $region10: #{tpu_custom_call.1} parent=1 // pred_check
      _
    $region11: #{tpu_custom_call.1} parent=1 // pred_check_branch
      %30 = sbr.rel (0) target = $region13
    $region12: #{tpu_custom_call.1} parent=1 // pred_region
      _
    $region13: #{tpu_custom_call.1} parent=1 // pred_fallthru
      _
    // Predicated region
    $region14: #{tpu_custom_call.1} parent=1 // pred_check
      _
    $region15: #{tpu_custom_call.1} parent=1 // pred_check_branch
      %32 = sbr.rel (0) target = $region17
    $region16: #{tpu_custom_call.1} parent=1 // pred_region
      _
    $region17: #{tpu_custom_call.1} parent=1 // pred_fallthru
      _
    // Predicated region
    $region18: #{tpu_custom_call.1} parent=1 // pred_check
      _
    $region19: #{tpu_custom_call.1} parent=1 // pred_check_branch
      %34 = sbr.rel (0) target = $region21
    $region20: #{tpu_custom_call.1} parent=1 // pred_region
      _
    $region21: #{tpu_custom_call.1} parent=1 // pred_fallthru
      _
    // Predicated region
    $region22: #{tpu_custom_call.1} parent=1 // pred_check
      _
    $region23: #{tpu_custom_call.1} parent=1 // pred_check_branch
      %36 = sbr.rel (0) target = $region25
    $region24: #{tpu_custom_call.1} parent=1 // pred_region
      _
    $region25: #{tpu_custom_call.1} parent=1 // pred_fallthru
      _
    // Predicated region
    $region26: #{tpu_custom_call.1} parent=1 // pred_check
      _
    $region27: #{tpu_custom_call.1} parent=1 // pred_check_branch
      %38 = sbr.rel (0) target = $region29
    $region28: #{tpu_custom_call.1} parent=1 // pred_region
      _
    $region29: #{tpu_custom_call.1} parent=1 // pred_fallthru
      _
    %v39 = vld [vmem:[%s2] sm:$0xff]
    %v40 = vld [vmem:[%s2 + $0x8] sm:$0xff]
    %v41 = vld [vmem:[%s2 + $0x10] sm:$0xff]
    %v42 = vld [vmem:[%s2 + $0x18] sm:$0xff]
    %v43 = vld [vmem:[%s2 + $0x20] sm:$0xff]
    %v44 = vld [vmem:[%s2 + $0x28] sm:$0xff]
    %v45 = vld [vmem:[%s2 + $0x30] sm:$0xff]
    %v46 = vld [vmem:[%s2 + $0x38] sm:$0xff]
    %v47 = vld [vmem:[%s2 + $0x40] sm:$0xff]
    %v48 = vld [vmem:[%s2 + $0x48] sm:$0xff]
    %v49 = vld [vmem:[%s2 + $0x50] sm:$0xff]
    %v50 = vld [vmem:[%s2 + $0x58] sm:$0xff]
    %v51 = vld [vmem:[%s2 + $0x60] sm:$0xff]
    %v52 = vld [vmem:[%s2 + $0x68] sm:$0xff]
    %v53 = vld [vmem:[%s2 + $0x70] sm:$0xff]
    %v54 = vld [vmem:[%s2 + $0x78] sm:$0xff]
    %v55 = vld [vmem:[%s3] sm:$0xff]
    %v56 = vld [vmem:[%s3 + $0x8] sm:$0xff]
    %v57 = vld [vmem:[%s3 + $0x10] sm:$0xff]
    %v58 = vld [vmem:[%s3 + $0x18] sm:$0xff]
    %v59 = vld [vmem:[%s3 + $0x20] sm:$0xff]
    %v60 = vld [vmem:[%s3 + $0x28] sm:$0xff]
    %v61 = vld [vmem:[%s3 + $0x30] sm:$0xff]
    %v62 = vld [vmem:[%s3 + $0x38] sm:$0xff]
    %v63 = vld [vmem:[%s3 + $0x40] sm:$0xff]
    %v64 = vld [vmem:[%s3 + $0x48] sm:$0xff]
    %v65 = vld [vmem:[%s3 + $0x50] sm:$0xff]
    %v66 = vld [vmem:[%s3 + $0x58] sm:$0xff]
    %v67 = vld [vmem:[%s3 + $0x60] sm:$0xff]
    %v68 = vld [vmem:[%s3 + $0x68] sm:$0xff]
    %v69 = vld [vmem:[%s3 + $0x70] sm:$0xff]
    %v70 = vld [vmem:[%s3 + $0x78] sm:$0xff]
    %vm71 = vcmask 261120
    %v73 = vsel %vm71, %v39, 0
    %v76 = vsel %vm71, %v40, 0
    %v79 = vsel %vm71, %v41, 0
    %v82 = vsel %vm71, %v42, 0
    %v85 = vsel %vm71, %v43, 0
    %v88 = vsel %vm71, %v44, 0
    %v91 = vsel %vm71, %v45, 0
    %v94 = vsel %vm71, %v46, 0
    %v97 = vsel %vm71, %v47, 0
    %v100 = vsel %vm71, %v48, 0
    %v103 = vsel %vm71, %v49, 0
    %v106 = vsel %vm71, %v50, 0
    %v109 = vsel %vm71, %v51, 0
    %v112 = vsel %vm71, %v52, 0
    %v115 = vsel %vm71, %v53, 0
    %v118 = vsel %vm71, %v54, 0
    %v121 = vsel %vm71, %v55, 0
    %v124 = vsel %vm71, %v56, 0
    %v127 = vsel %vm71, %v57, 0
    %v130 = vsel %vm71, %v58, 0
    %v133 = vsel %vm71, %v59, 0
    %v136 = vsel %vm71, %v60, 0
    %v139 = vsel %vm71, %v61, 0
    %v142 = vsel %vm71, %v62, 0
    %v145 = vsel %vm71, %v63, 0
    %v148 = vsel %vm71, %v64, 0
    %v151 = vsel %vm71, %v65, 0
    %v154 = vsel %vm71, %v66, 0
    %v157 = vsel %vm71, %v67, 0
    %v160 = vsel %vm71, %v68, 0
    %v163 = vsel %vm71, %v69, 0
    %v166 = vsel %vm71, %v70, 0
    %168 = vmatprep.subr.mxu0 0.0
    %169 = vmatpush1.xpose.msra.mxu0 %v121
    %170 = vmatprep.subr.mxu0 0.0
    %171 = vmatpush1.xpose.msra.mxu0 %v124
    %172 = vmatprep.subr.mxu0 0.0
    %173 = vmatpush1.xpose.msra.mxu0 %v127
    %174 = vmatprep.subr.mxu0 0.0
    %175 = vmatpush1.xpose.msra.mxu0 %v130
    %176 = vmatprep.subr.mxu0 0.0
    %177 = vmatpush1.xpose.msra.mxu0 %v133
    %178 = vmatprep.subr.mxu0 0.0
    %179 = vmatpush1.xpose.msra.mxu0 %v136
    %180 = vmatprep.subr.mxu0 0.0
    %181 = vmatpush1.xpose.msra.mxu0 %v139
    %182 = vmatprep.subr.mxu0 0.0
    %183 = vmatpush1.xpose.msra.mxu0 %v142
    %184 = vmatprep.subr.mxu0 0.0
    %185 = vmatpush1.xpose.msra.mxu0 %v145
    %186 = vmatprep.subr.mxu0 0.0
    %187 = vmatpush1.xpose.msra.mxu0 %v148
    %188 = vmatprep.subr.mxu0 0.0
    %189 = vmatpush1.xpose.msra.mxu0 %v151
    %190 = vmatprep.subr.mxu0 0.0
    %191 = vmatpush1.xpose.msra.mxu0 %v154
    %192 = vmatprep.subr.mxu0 0.0
    %193 = vmatpush1.xpose.msra.mxu0 %v157
    %194 = vmatprep.subr.mxu0 0.0
    %195 = vmatpush1.xpose.msra.mxu0 %v160
    %196 = vmatprep.subr.mxu0 0.0
    %197 = vmatpush1.xpose.msra.mxu0 %v163
    %198 = vmatprep.subr.mxu0 0.0
    %199 = vmatpush1.xpose.msra.mxu0 %v166
    %200 = vmatprep.subr.mxu0 0.0
    %201 = vmatpush1.xpose.msra.mxu0 0.0
    %202 = vmatprep.subr.mxu0 0.0
    %203 = vmatpush1.xpose.msra.mxu0 0.0
    %204 = vmatprep.subr.mxu0 0.0
    %205 = vmatpush1.xpose.msra.mxu0 0.0
    %206 = vmatprep.subr.mxu0 0.0
    %207 = vmatpush1.xpose.msra.mxu0 0.0
    %208 = vmatprep.subr.mxu0 0.0
    %209 = vmatpush1.xpose.msra.mxu0 0.0
    %210 = vmatprep.subr.mxu0 0.0
    %211 = vmatpush1.xpose.msra.mxu0 0.0
    %212 = vmatprep.subr.mxu0 0.0
    %213 = vmatpush1.xpose.msra.mxu0 0.0
    %214 = vmatprep.subr.mxu0 0.0
    %215 = vmatpush1.xpose.msra.mxu0 0.0
    %216 = vmatprep.subr.mxu0 0.0
    %217 = vmatpush1.xpose.msra.mxu0 0.0
    %218 = vmatprep.subr.mxu0 0.0
    %219 = vmatpush1.xpose.msra.mxu0 0.0
    %220 = vmatprep.subr.mxu0 0.0
    %221 = vmatpush1.xpose.msra.mxu0 0.0
    %222 = vmatprep.subr.mxu0 0.0
    %223 = vmatpush1.xpose.msra.mxu0 0.0
    %224 = vmatprep.subr.mxu0 0.0
    %225 = vmatpush1.xpose.msra.mxu0 0.0
    %226 = vmatprep.subr.mxu0 0.0
    %227 = vmatpush1.xpose.msra.mxu0 0.0
    %228 = vmatprep.subr.mxu0 0.0
    %229 = vmatpush1.xpose.msra.mxu0 0.0
    %230 = vmatprep.subr.mxu0 0.0
    %231 = vmatpush1.xpose.msra.mxu0 0.0
    %232 = vmatprep.mubr.f32.mxu0 0.0
    %233 = vmatmul.mubr.f32.gmra.mrb[0].mxu0 %v73
    %v234 = vpop.f32.mrb[0].mxu0
    %v235 = vadd.f32 0.0, %v234
    %v236 = vpop.f32.mrb[0].mxu0
    %237 = vmatprep.mubr.f32.mxu0 0.0
    %238 = vmatmul.mubr.f32.gmra.mrb[0].mxu0 %v76
    %v239 = vpop.f32.mrb[0].mxu0
    %v240 = vadd.f32 0.0, %v239
    %v241 = vpop.f32.mrb[0].mxu0
    %242 = vmatprep.mubr.f32.mxu0 0.0
    %243 = vmatmul.mubr.f32.gmra.mrb[0].mxu0 %v79
    %v244 = vpop.f32.mrb[0].mxu0
    %v245 = vadd.f32 0.0, %v244
    %v246 = vpop.f32.mrb[0].mxu0
    %247 = vmatprep.mubr.f32.mxu0 0.0
    %248 = vmatmul.mubr.f32.gmra.mrb[0].mxu0 %v82
    %v249 = vpop.f32.mrb[0].mxu0
    %v250 = vadd.f32 0.0, %v249
    %v251 = vpop.f32.mrb[0].mxu0
    %252 = vmatprep.mubr.f32.mxu0 0.0
    %253 = vmatmul.mubr.f32.gmra.mrb[0].mxu0 %v85
    %v254 = vpop.f32.mrb[0].mxu0
    %v255 = vadd.f32 0.0, %v254
    %v256 = vpop.f32.mrb[0].mxu0
    %257 = vmatprep.mubr.f32.mxu0 0.0
    %258 = vmatmul.mubr.f32.gmra.mrb[0].mxu0 %v88
    %v259 = vpop.f32.mrb[0].mxu0
    %v260 = vadd.f32 0.0, %v259
    %v261 = vpop.f32.mrb[0].mxu0
    %262 = vmatprep.mubr.f32.mxu0 0.0
    %263 = vmatmul.mubr.f32.gmra.mrb[0].mxu0 %v91
    %v264 = vpop.f32.mrb[0].mxu0
    %v265 = vadd.f32 0.0, %v264
    %v266 = vpop.f32.mrb[0].mxu0
    %267 = vmatprep.mubr.f32.mxu0 0.0
    %268 = vmatmul.mubr.f32.gmra.mrb[0].mxu0 %v94
    %v269 = vpop.f32.mrb[0].mxu0
    %v270 = vadd.f32 0.0, %v269
    %v271 = vpop.f32.mrb[0].mxu0
    %272 = vmatprep.mubr.f32.mxu0 0.0
    %273 = vmatmul.mubr.f32.gmra.mrb[0].mxu0 %v97
    %v274 = vpop.f32.mrb[0].mxu0
    %v275 = vadd.f32 0.0, %v274
    %v276 = vpop.f32.mrb[0].mxu0
    %277 = vmatprep.mubr.f32.mxu0 0.0
    %278 = vmatmul.mubr.f32.gmra.mrb[0].mxu0 %v100
    %v279 = vpop.f32.mrb[0].mxu0
    %v280 = vadd.f32 0.0, %v279
    %v281 = vpop.f32.mrb[0].mxu0
    %282 = vmatprep.mubr.f32.mxu0 0.0
    %283 = vmatmul.mubr.f32.gmra.mrb[0].mxu0 %v103
    %v284 = vpop.f32.mrb[0].mxu0
    %v285 = vadd.f32 0.0, %v284
    %v286 = vpop.f32.mrb[0].mxu0
    %287 = vmatprep.mubr.f32.mxu0 0.0
    %288 = vmatmul.mubr.f32.gmra.mrb[0].mxu0 %v106
    %v289 = vpop.f32.mrb[0].mxu0
    %v290 = vadd.f32 0.0, %v289
    %v291 = vpop.f32.mrb[0].mxu0
    %292 = vmatprep.mubr.f32.mxu0 0.0
    %293 = vmatmul.mubr.f32.gmra.mrb[0].mxu0 %v109
    %v294 = vpop.f32.mrb[0].mxu0
    %v295 = vadd.f32 0.0, %v294
    %v296 = vpop.f32.mrb[0].mxu0
    %297 = vmatprep.mubr.f32.mxu0 0.0
    %298 = vmatmul.mubr.f32.gmra.mrb[0].mxu0 %v112
    %v299 = vpop.f32.mrb[0].mxu0
    %v300 = vadd.f32 0.0, %v299
    %v301 = vpop.f32.mrb[0].mxu0
    %302 = vmatprep.mubr.f32.mxu0 0.0
    %303 = vmatmul.mubr.f32.gmra.mrb[0].mxu0 %v115
    %v304 = vpop.f32.mrb[0].mxu0
    %v305 = vadd.f32 0.0, %v304
    %v306 = vpop.f32.mrb[0].mxu0
    %307 = vmatprep.mubr.f32.mxu0 0.0
    %308 = vmatmul.mubr.f32.gmra.mrb[0].mxu0 %v118
    %v309 = vpop.f32.mrb[0].mxu0
    %v310 = vadd.f32 0.0, %v309
    %v311 = vpop.f32.mrb[0].mxu0
    %312 = vdwg.mxu0
    %v313 = vld [vmem:[%s4] sm:$0xff]
    %v314 = vld [vmem:[%s4 + $0x8] sm:$0xff]
    %v315 = vld [vmem:[%s4 + $0x10] sm:$0xff]
    %v316 = vld [vmem:[%s4 + $0x18] sm:$0xff]
    %v317 = vld [vmem:[%s4 + $0x20] sm:$0xff]
    %v318 = vld [vmem:[%s4 + $0x28] sm:$0xff]
    %v319 = vld [vmem:[%s4 + $0x30] sm:$0xff]
    %v320 = vld [vmem:[%s4 + $0x38] sm:$0xff]
    %v321 = vld [vmem:[%s4 + $0x40] sm:$0xff]
    %v322 = vld [vmem:[%s4 + $0x48] sm:$0xff]
    %v323 = vld [vmem:[%s4 + $0x50] sm:$0xff]
    %v324 = vld [vmem:[%s4 + $0x58] sm:$0xff]
    %v325 = vld [vmem:[%s4 + $0x60] sm:$0xff]
    %v326 = vld [vmem:[%s4 + $0x68] sm:$0xff]
    %v327 = vld [vmem:[%s4 + $0x70] sm:$0xff]
    %v328 = vld [vmem:[%s4 + $0x78] sm:$0xff]
    %v329 = vld [vmem:[%s5] sm:$0x1]
    %v330 = vmul.f32 %v235, 2.0
    %v331 = vmul.f32 %v240, 2.0
    %v332 = vmul.f32 %v245, 2.0
    %v333 = vmul.f32 %v250, 2.0
    %v334 = vmul.f32 %v255, 2.0
    %v335 = vmul.f32 %v260, 2.0
    %v336 = vmul.f32 %v265, 2.0
    %v337 = vmul.f32 %v270, 2.0
    %v338 = vmul.f32 %v275, 2.0
    %v339 = vmul.f32 %v280, 2.0
    %v340 = vmul.f32 %v285, 2.0
    %v341 = vmul.f32 %v290, 2.0
    %v342 = vmul.f32 %v295, 2.0
    %v343 = vmul.f32 %v300, 2.0
    %v344 = vmul.f32 %v305, 2.0
    %v345 = vmul.f32 %v310, 2.0
    %v347 = vlaneseq
    %v348 = vshrl.u32 %v347, 7
    %v349 = vsub.s32 0, %v348
    %v350 = vrot.slane %v329, %v349
    %v352 = vsub.f32 %v350, %v330
    %v353 = vsub.f32 %v350, %v331
    %v354 = vsub.f32 %v350, %v332
    %v355 = vsub.f32 %v350, %v333
    %v356 = vsub.f32 %v350, %v334
    %v357 = vsub.f32 %v350, %v335
    %v358 = vsub.f32 %v350, %v336
    %v359 = vsub.f32 %v350, %v337
    %v360 = vsub.f32 %v350, %v338
    %v361 = vsub.f32 %v350, %v339
    %v362 = vsub.f32 %v350, %v340
    %v363 = vsub.f32 %v350, %v341
    %v364 = vsub.f32 %v350, %v342
    %v365 = vsub.f32 %v350, %v343
    %v366 = vsub.f32 %v350, %v344
    %v367 = vsub.f32 %v350, %v345
    %369 = vset.pattern.permute.xlu0 0
    %370 = vperm.xlu0 %369, %v313
    %v371 = vpop.permute.xlu0 %370
    %374 = vset.pattern.permute.xlu0 0
    %375 = vperm.xlu0 %374, %v314
    %v376 = vpop.permute.xlu0 %375
    %379 = vset.pattern.permute.xlu0 0
    %380 = vperm.xlu0 %379, %v315
    %v381 = vpop.permute.xlu0 %380
    %384 = vset.pattern.permute.xlu0 0
    %385 = vperm.xlu0 %384, %v316
    %v386 = vpop.permute.xlu0 %385
    %389 = vset.pattern.permute.xlu0 0
    %390 = vperm.xlu0 %389, %v317
    %v391 = vpop.permute.xlu0 %390
    %394 = vset.pattern.permute.xlu0 0
    %395 = vperm.xlu0 %394, %v318
    %v396 = vpop.permute.xlu0 %395
    %399 = vset.pattern.permute.xlu0 0
    %400 = vperm.xlu0 %399, %v319
    %v401 = vpop.permute.xlu0 %400
    %404 = vset.pattern.permute.xlu0 0
    %405 = vperm.xlu0 %404, %v320
    %v406 = vpop.permute.xlu0 %405
    %409 = vset.pattern.permute.xlu0 0
    %410 = vperm.xlu0 %409, %v321
    %v411 = vpop.permute.xlu0 %410
    %414 = vset.pattern.permute.xlu0 0
    %415 = vperm.xlu0 %414, %v322
    %v416 = vpop.permute.xlu0 %415
    %419 = vset.pattern.permute.xlu0 0
    %420 = vperm.xlu0 %419, %v323
    %v421 = vpop.permute.xlu0 %420
    %424 = vset.pattern.permute.xlu0 0
    %425 = vperm.xlu0 %424, %v324
    %v426 = vpop.permute.xlu0 %425
    %429 = vset.pattern.permute.xlu0 0
    %430 = vperm.xlu0 %429, %v325
    %v431 = vpop.permute.xlu0 %430
    %434 = vset.pattern.permute.xlu0 0
    %435 = vperm.xlu0 %434, %v326
    %v436 = vpop.permute.xlu0 %435
    %439 = vset.pattern.permute.xlu0 0
    %440 = vperm.xlu0 %439, %v327
    %v441 = vpop.permute.xlu0 %440
    %444 = vset.pattern.permute.xlu0 0
    %445 = vperm.xlu0 %444, %v328
    %v446 = vpop.permute.xlu0 %445
    %v448 = vadd.f32 %v352, %v371
    %v449 = vadd.f32 %v353, %v376
    %v450 = vadd.f32 %v354, %v381
    %v451 = vadd.f32 %v355, %v386
    %v452 = vadd.f32 %v356, %v391
    %v453 = vadd.f32 %v357, %v396
    %v454 = vadd.f32 %v358, %v401
    %v455 = vadd.f32 %v359, %v406
    %v456 = vadd.f32 %v360, %v411
    %v457 = vadd.f32 %v361, %v416
    %v458 = vadd.f32 %v362, %v421
    %v459 = vadd.f32 %v363, %v426
    %v460 = vadd.f32 %v364, %v431
    %v461 = vadd.f32 %v365, %v436
    %v462 = vadd.f32 %v366, %v441
    %v463 = vadd.f32 %v367, %v446
    %v464 = vmax.f32 %v448, 0.0
    %v465 = vmax.f32 %v449, 0.0
    %v466 = vmax.f32 %v450, 0.0
    %v467 = vmax.f32 %v451, 0.0
    %v468 = vmax.f32 %v452, 0.0
    %v469 = vmax.f32 %v453, 0.0
    %v470 = vmax.f32 %v454, 0.0
    %v471 = vmax.f32 %v455, 0.0
    %v472 = vmax.f32 %v456, 0.0
    %v473 = vmax.f32 %v457, 0.0
    %v474 = vmax.f32 %v458, 0.0
    %v475 = vmax.f32 %v459, 0.0
    %v476 = vmax.f32 %v460, 0.0
    %v477 = vmax.f32 %v461, 0.0
    %v478 = vmax.f32 %v462, 0.0
    %v479 = vmax.f32 %v463, 0.0
    %vm480 = vcmp.gt.f32.partialorder %v464, 0.0
    %vm481 = vcmp.gt.f32.partialorder %v465, 0.0
    %vm482 = vcmp.gt.f32.partialorder %v466, 0.0
    %vm483 = vcmp.gt.f32.partialorder %v467, 0.0
    %vm484 = vcmp.gt.f32.partialorder %v468, 0.0
    %vm485 = vcmp.gt.f32.partialorder %v469, 0.0
    %vm486 = vcmp.gt.f32.partialorder %v470, 0.0
    %vm487 = vcmp.gt.f32.partialorder %v471, 0.0
    %vm488 = vcmp.gt.f32.partialorder %v472, 0.0
    %vm489 = vcmp.gt.f32.partialorder %v473, 0.0
    %vm490 = vcmp.gt.f32.partialorder %v474, 0.0
    %vm491 = vcmp.gt.f32.partialorder %v475, 0.0
    %vm492 = vcmp.gt.f32.partialorder %v476, 0.0
    %vm493 = vcmp.gt.f32.partialorder %v477, 0.0
    %vm494 = vcmp.gt.f32.partialorder %v478, 0.0
    %vm495 = vcmp.gt.f32.partialorder %v479, 0.0
    %v496 = vrsqrt.pop %v464
    %v497 = vmul.f32 %v464, %v496
    %vm498 = vcmp.eq.f32.partialorder %v464, inf
    %v499 = vsel %vm498, %v464, %v497
    %vm500 = vcmp.eq.f32.partialorder %v464, 0.0
    %v501 = vand.u32 %v464, 2147483648
    %v502 = vsel %vm500, %v501, %v499
    %v503 = vrsqrt.pop %v465
    %v504 = vmul.f32 %v465, %v503
    %vm505 = vcmp.eq.f32.partialorder %v465, inf
    %v506 = vsel %vm505, %v465, %v504
    %vm507 = vcmp.eq.f32.partialorder %v465, 0.0
    %v508 = vand.u32 %v465, 2147483648
    %v509 = vsel %vm507, %v508, %v506
    %v510 = vrsqrt.pop %v466
    %v511 = vmul.f32 %v466, %v510
    %vm512 = vcmp.eq.f32.partialorder %v466, inf
    %v513 = vsel %vm512, %v466, %v511
    %vm514 = vcmp.eq.f32.partialorder %v466, 0.0
    %v515 = vand.u32 %v466, 2147483648
    %v516 = vsel %vm514, %v515, %v513
    %v517 = vrsqrt.pop %v467
    %v518 = vmul.f32 %v467, %v517
    %vm519 = vcmp.eq.f32.partialorder %v467, inf
    %v520 = vsel %vm519, %v467, %v518
    %vm521 = vcmp.eq.f32.partialorder %v467, 0.0
    %v522 = vand.u32 %v467, 2147483648
    %v523 = vsel %vm521, %v522, %v520
    %v524 = vrsqrt.pop %v468
    %v525 = vmul.f32 %v468, %v524
    %vm526 = vcmp.eq.f32.partialorder %v468, inf
    %v527 = vsel %vm526, %v468, %v525
    %vm528 = vcmp.eq.f32.partialorder %v468, 0.0
    %v529 = vand.u32 %v468, 2147483648
    %v530 = vsel %vm528, %v529, %v527
    %v531 = vrsqrt.pop %v469
    %v532 = vmul.f32 %v469, %v531
    %vm533 = vcmp.eq.f32.partialorder %v469, inf
    %v534 = vsel %vm533, %v469, %v532
    %vm535 = vcmp.eq.f32.partialorder %v469, 0.0
    %v536 = vand.u32 %v469, 2147483648
    %v537 = vsel %vm535, %v536, %v534
    %v538 = vrsqrt.pop %v470
    %v539 = vmul.f32 %v470, %v538
    %vm540 = vcmp.eq.f32.partialorder %v470, inf
    %v541 = vsel %vm540, %v470, %v539
    %vm542 = vcmp.eq.f32.partialorder %v470, 0.0
    %v543 = vand.u32 %v470, 2147483648
    %v544 = vsel %vm542, %v543, %v541
    %v545 = vrsqrt.pop %v471
    %v546 = vmul.f32 %v471, %v545
    %vm547 = vcmp.eq.f32.partialorder %v471, inf
    %v548 = vsel %vm547, %v471, %v546
    %vm549 = vcmp.eq.f32.partialorder %v471, 0.0
    %v550 = vand.u32 %v471, 2147483648
    %v551 = vsel %vm549, %v550, %v548
    %v552 = vrsqrt.pop %v472
    %v553 = vmul.f32 %v472, %v552
    %vm554 = vcmp.eq.f32.partialorder %v472, inf
    %v555 = vsel %vm554, %v472, %v553
    %vm556 = vcmp.eq.f32.partialorder %v472, 0.0
    %v557 = vand.u32 %v472, 2147483648
    %v558 = vsel %vm556, %v557, %v555
    %v559 = vrsqrt.pop %v473
    %v560 = vmul.f32 %v473, %v559
    %vm561 = vcmp.eq.f32.partialorder %v473, inf
    %v562 = vsel %vm561, %v473, %v560
    %vm563 = vcmp.eq.f32.partialorder %v473, 0.0
    %v564 = vand.u32 %v473, 2147483648
    %v565 = vsel %vm563, %v564, %v562
    %v566 = vrsqrt.pop %v474
    %v567 = vmul.f32 %v474, %v566
    %vm568 = vcmp.eq.f32.partialorder %v474, inf
    %v569 = vsel %vm568, %v474, %v567
    %vm570 = vcmp.eq.f32.partialorder %v474, 0.0
    %v571 = vand.u32 %v474, 2147483648
    %v572 = vsel %vm570, %v571, %v569
    %v573 = vrsqrt.pop %v475
    %v574 = vmul.f32 %v475, %v573
    %vm575 = vcmp.eq.f32.partialorder %v475, inf
    %v576 = vsel %vm575, %v475, %v574
    %vm577 = vcmp.eq.f32.partialorder %v475, 0.0
    %v578 = vand.u32 %v475, 2147483648
    %v579 = vsel %vm577, %v578, %v576
    %v580 = vrsqrt.pop %v476
    %v581 = vmul.f32 %v476, %v580
    %vm582 = vcmp.eq.f32.partialorder %v476, inf
    %v583 = vsel %vm582, %v476, %v581
    %vm584 = vcmp.eq.f32.partialorder %v476, 0.0
    %v585 = vand.u32 %v476, 2147483648
    %v586 = vsel %vm584, %v585, %v583
    %v587 = vrsqrt.pop %v477
    %v588 = vmul.f32 %v477, %v587
    %vm589 = vcmp.eq.f32.partialorder %v477, inf
    %v590 = vsel %vm589, %v477, %v588
    %vm591 = vcmp.eq.f32.partialorder %v477, 0.0
    %v592 = vand.u32 %v477, 2147483648
    %v593 = vsel %vm591, %v592, %v590
    %v594 = vrsqrt.pop %v478
    %v595 = vmul.f32 %v478, %v594
    %vm596 = vcmp.eq.f32.partialorder %v478, inf
    %v597 = vsel %vm596, %v478, %v595
    %vm598 = vcmp.eq.f32.partialorder %v478, 0.0
    %v599 = vand.u32 %v478, 2147483648
    %v600 = vsel %vm598, %v599, %v597
    %v601 = vrsqrt.pop %v479
    %v602 = vmul.f32 %v479, %v601
    %vm603 = vcmp.eq.f32.partialorder %v479, inf
    %v604 = vsel %vm603, %v479, %v602
    %vm605 = vcmp.eq.f32.partialorder %v479, 0.0
    %v606 = vand.u32 %v479, 2147483648
    %v607 = vsel %vm605, %v606, %v604
    %v608 = vsel %vm480, %v502, 0.0
    %v609 = vsel %vm481, %v509, 0.0
    %v610 = vsel %vm482, %v516, 0.0
    %v611 = vsel %vm483, %v523, 0.0
    %v612 = vsel %vm484, %v530, 0.0
    %v613 = vsel %vm485, %v537, 0.0
    %v614 = vsel %vm486, %v544, 0.0
    %v615 = vsel %vm487, %v551, 0.0
    %v616 = vsel %vm488, %v558, 0.0
    %v617 = vsel %vm489, %v565, 0.0
    %v618 = vsel %vm490, %v572, 0.0
    %v619 = vsel %vm491, %v579, 0.0
    %v620 = vsel %vm492, %v586, 0.0
    %v621 = vsel %vm493, %v593, 0.0
    %v622 = vsel %vm494, %v600, 0.0
    %v623 = vsel %vm495, %v607, 0.0
    %v624 = vld [vmem:[%s6] sm:$0xff]
    %v625 = vld [vmem:[%s6 + $0x8] sm:$0xff]
    %v626 = vld [vmem:[%s6 + $0x10] sm:$0xff]
    %v627 = vld [vmem:[%s6 + $0x18] sm:$0xff]
    %v628 = vld [vmem:[%s6 + $0x20] sm:$0xff]
    %v629 = vld [vmem:[%s6 + $0x28] sm:$0xff]
    %v630 = vld [vmem:[%s6 + $0x30] sm:$0xff]
    %v631 = vld [vmem:[%s6 + $0x38] sm:$0xff]
    %v632 = vld [vmem:[%s6 + $0x40] sm:$0xff]
    %v633 = vld [vmem:[%s6 + $0x48] sm:$0xff]
    %v634 = vld [vmem:[%s6 + $0x50] sm:$0xff]
    %v635 = vld [vmem:[%s6 + $0x58] sm:$0xff]
    %v636 = vld [vmem:[%s6 + $0x60] sm:$0xff]
    %v637 = vld [vmem:[%s6 + $0x68] sm:$0xff]
    %v638 = vld [vmem:[%s6 + $0x70] sm:$0xff]
    %v639 = vld [vmem:[%s6 + $0x78] sm:$0xff]
    %v640 = vld [vmem:[%s7] sm:$0x1]
    %v641 = vld [vmem:[%s8] sm:$0x1]
    %vm642 = vcmp.gt.f32.partialorder %v641, 0.5
    %643 = vset.pattern.permute.xlu0 0
    %644 = vperm.xlu0 %643, %v624
    %v645 = vpop.permute.xlu0 %644
    %646 = vset.pattern.permute.xlu0 0
    %647 = vperm.xlu0 %646, %v625
    %v648 = vpop.permute.xlu0 %647
    %649 = vset.pattern.permute.xlu0 0
    %650 = vperm.xlu0 %649, %v626
    %v651 = vpop.permute.xlu0 %650
    %652 = vset.pattern.permute.xlu0 0
    %653 = vperm.xlu0 %652, %v627
    %v654 = vpop.permute.xlu0 %653
    %655 = vset.pattern.permute.xlu0 0
    %656 = vperm.xlu0 %655, %v628
    %v657 = vpop.permute.xlu0 %656
    %658 = vset.pattern.permute.xlu0 0
    %659 = vperm.xlu0 %658, %v629
    %v660 = vpop.permute.xlu0 %659
    %661 = vset.pattern.permute.xlu0 0
    %662 = vperm.xlu0 %661, %v630
    %v663 = vpop.permute.xlu0 %662
    %664 = vset.pattern.permute.xlu0 0
    %665 = vperm.xlu0 %664, %v631
    %v666 = vpop.permute.xlu0 %665
    %667 = vset.pattern.permute.xlu0 0
    %668 = vperm.xlu0 %667, %v632
    %v669 = vpop.permute.xlu0 %668
    %670 = vset.pattern.permute.xlu0 0
    %671 = vperm.xlu0 %670, %v633
    %v672 = vpop.permute.xlu0 %671
    %673 = vset.pattern.permute.xlu0 0
    %674 = vperm.xlu0 %673, %v634
    %v675 = vpop.permute.xlu0 %674
    %676 = vset.pattern.permute.xlu0 0
    %677 = vperm.xlu0 %676, %v635
    %v678 = vpop.permute.xlu0 %677
    %679 = vset.pattern.permute.xlu0 0
    %680 = vperm.xlu0 %679, %v636
    %v681 = vpop.permute.xlu0 %680
    %682 = vset.pattern.permute.xlu0 0
    %683 = vperm.xlu0 %682, %v637
    %v684 = vpop.permute.xlu0 %683
    %685 = vset.pattern.permute.xlu0 0
    %686 = vperm.xlu0 %685, %v638
    %v687 = vpop.permute.xlu0 %686
    %688 = vset.pattern.permute.xlu0 0
    %689 = vperm.xlu0 %688, %v639
    %v690 = vpop.permute.xlu0 %689
    %v691 = vlaneseq
    %v692 = vshrl.u32 %v691, 7
    %v693 = vsub.s32 0, %v692
    %v694 = vrot.slane %v640, %v693
    %vm695 = vcmp.eq.s32.totalorder %v645, %v694
    %vm696 = vcmp.eq.s32.totalorder %v648, %v694
    %vm697 = vcmp.eq.s32.totalorder %v651, %v694
    %vm698 = vcmp.eq.s32.totalorder %v654, %v694
    %vm699 = vcmp.eq.s32.totalorder %v657, %v694
    %vm700 = vcmp.eq.s32.totalorder %v660, %v694
    %vm701 = vcmp.eq.s32.totalorder %v663, %v694
    %vm702 = vcmp.eq.s32.totalorder %v666, %v694
    %vm703 = vcmp.eq.s32.totalorder %v669, %v694
    %vm704 = vcmp.eq.s32.totalorder %v672, %v694
    %vm705 = vcmp.eq.s32.totalorder %v675, %v694
    %vm706 = vcmp.eq.s32.totalorder %v678, %v694
    %vm707 = vcmp.eq.s32.totalorder %v681, %v694
    %vm708 = vcmp.eq.s32.totalorder %v684, %v694
    %vm709 = vcmp.eq.s32.totalorder %v687, %v694
    %vm710 = vcmp.eq.s32.totalorder %v690, %v694
    %vm711 = vmxor %vm695, 1
    %vm712 = vmxor %vm696, 1
    %vm713 = vmxor %vm697, 1
    %vm714 = vmxor %vm698, 1
    %vm715 = vmxor %vm699, 1
    %vm716 = vmxor %vm700, 1
    %vm717 = vmxor %vm701, 1
    %vm718 = vmxor %vm702, 1
    %vm719 = vmxor %vm703, 1
    %vm720 = vmxor %vm704, 1
    %vm721 = vmxor %vm705, 1
    %vm722 = vmxor %vm706, 1
    %vm723 = vmxor %vm707, 1
    %vm724 = vmxor %vm708, 1
    %vm725 = vmxor %vm709, 1
    %vm726 = vmxor %vm710, 1
    %v727 = vsel %vm642, 1, 0
    %v728 = vlaneseq
    %v729 = vshrl.u32 %v728, 7
    %v730 = vsub.s32 0, %v729
    %v731 = vrot.slane %v727, %v730
    %vm732 = vcmp.eq.s32.totalorder %v731, 1
    %vm733 = vmand %vm711, %vm732
    %vm734 = vmand %vm712, %vm732
    %vm735 = vmand %vm713, %vm732
    %vm736 = vmand %vm714, %vm732
    %vm737 = vmand %vm715, %vm732
    %vm738 = vmand %vm716, %vm732
    %vm739 = vmand %vm717, %vm732
    %vm740 = vmand %vm718, %vm732
    %vm741 = vmand %vm719, %vm732
    %vm742 = vmand %vm720, %vm732
    %vm743 = vmand %vm721, %vm732
    %vm744 = vmand %vm722, %vm732
    %vm745 = vmand %vm723, %vm732
    %vm746 = vmand %vm724, %vm732
    %vm747 = vmand %vm725, %vm732
    %vm748 = vmand %vm726, %vm732
    %v749 = vlaneseq
    %v750 = vand.u32 %v749, 127
    %s751 = smul.u32 0, 128
    %v752 = vlaneseq
    %v753 = vshrl.u32 %v752, 7
    %v754 = vadd.s32 %v753, 8
    %v755 = vadd.s32 %v753, 16
    %v756 = vadd.s32 %v753, 24
    %v757 = vadd.s32 %v753, 32
    %v758 = vadd.s32 %v753, 40
    %v759 = vadd.s32 %v753, 48
    %v760 = vadd.s32 %v753, 56
    %v761 = vadd.s32 %v753, 64
    %v762 = vadd.s32 %v753, 72
    %v763 = vadd.s32 %v753, 80
    %v764 = vadd.s32 %v753, 88
    %v765 = vadd.s32 %v753, 96
    %v766 = vadd.s32 %v753, 104
    %v767 = vadd.s32 %v753, 112
    %v768 = vadd.s32 %v753, 120
    %v769 = vstv %s751
    %v770 = vadd.s32 %v769, %v753
    %v771 = vadd.s32 %v769, %v754
    %v772 = vadd.s32 %v769, %v755
    %v773 = vadd.s32 %v769, %v756
    %v774 = vadd.s32 %v769, %v757
    %v775 = vadd.s32 %v769, %v758
    %v776 = vadd.s32 %v769, %v759
    %v777 = vadd.s32 %v769, %v760
    %v778 = vadd.s32 %v769, %v761
    %v779 = vadd.s32 %v769, %v762
    %v780 = vadd.s32 %v769, %v763
    %v781 = vadd.s32 %v769, %v764
    %v782 = vadd.s32 %v769, %v765
    %v783 = vadd.s32 %v769, %v766
    %v784 = vadd.s32 %v769, %v767
    %v785 = vadd.s32 %v769, %v768
    %v786 = vsel %vm733, %v608, -1e+30
    %v787 = vsel %vm734, %v609, -1e+30
    %v788 = vsel %vm735, %v610, -1e+30
    %v789 = vsel %vm736, %v611, -1e+30
    %v790 = vsel %vm737, %v612, -1e+30
    %v791 = vsel %vm738, %v613, -1e+30
    %v792 = vsel %vm739, %v614, -1e+30
    %v793 = vsel %vm740, %v615, -1e+30
    %v794 = vsel %vm741, %v616, -1e+30
    %v795 = vsel %vm742, %v617, -1e+30
    %v796 = vsel %vm743, %v618, -1e+30
    %v797 = vsel %vm744, %v619, -1e+30
    %v798 = vsel %vm745, %v620, -1e+30
    %v799 = vsel %vm746, %v621, -1e+30
    %v800 = vsel %vm747, %v622, -1e+30
    %v801 = vsel %vm748, %v623, -1e+30
    %802 = vmax.xlane.f32.xlu0 %v786
    %v803 = vpop.xlane.xlu0 %802
    %804 = vmax.xlane.f32.xlu0 %v787
    %v805 = vpop.xlane.xlu0 %804
    %806 = vmax.xlane.f32.xlu0 %v788
    %v807 = vpop.xlane.xlu0 %806
    %808 = vmax.xlane.f32.xlu0 %v789
    %v809 = vpop.xlane.xlu0 %808
    %810 = vmax.xlane.f32.xlu0 %v790
    %v811 = vpop.xlane.xlu0 %810
    %812 = vmax.xlane.f32.xlu0 %v791
    %v813 = vpop.xlane.xlu0 %812
    %814 = vmax.xlane.f32.xlu0 %v792
    %v815 = vpop.xlane.xlu0 %814
    %816 = vmax.xlane.f32.xlu0 %v793
    %v817 = vpop.xlane.xlu0 %816
    %818 = vmax.xlane.f32.xlu0 %v794
    %v819 = vpop.xlane.xlu0 %818
    %820 = vmax.xlane.f32.xlu0 %v795
    %v821 = vpop.xlane.xlu0 %820
    %822 = vmax.xlane.f32.xlu0 %v796
    %v823 = vpop.xlane.xlu0 %822
    %824 = vmax.xlane.f32.xlu0 %v797
    %v825 = vpop.xlane.xlu0 %824
    %826 = vmax.xlane.f32.xlu0 %v798
    %v827 = vpop.xlane.xlu0 %826
    %828 = vmax.xlane.f32.xlu0 %v799
    %v829 = vpop.xlane.xlu0 %828
    %830 = vmax.xlane.f32.xlu0 %v800
    %v831 = vpop.xlane.xlu0 %830
    %832 = vmax.xlane.f32.xlu0 %v801
    %v833 = vpop.xlane.xlu0 %832
    %vm834 = vcmp.gt.f32.partialorder %v803, -5e+29
    %vm835 = vcmp.gt.f32.partialorder %v805, -5e+29
    %vm836 = vcmp.gt.f32.partialorder %v807, -5e+29
    %vm837 = vcmp.gt.f32.partialorder %v809, -5e+29
    %vm838 = vcmp.gt.f32.partialorder %v811, -5e+29
    %vm839 = vcmp.gt.f32.partialorder %v813, -5e+29
    %vm840 = vcmp.gt.f32.partialorder %v815, -5e+29
    %vm841 = vcmp.gt.f32.partialorder %v817, -5e+29
    %vm842 = vcmp.gt.f32.partialorder %v819, -5e+29
    %vm843 = vcmp.gt.f32.partialorder %v821, -5e+29
    %vm844 = vcmp.gt.f32.partialorder %v823, -5e+29
    %vm845 = vcmp.gt.f32.partialorder %v825, -5e+29
    %vm846 = vcmp.gt.f32.partialorder %v827, -5e+29
    %vm847 = vcmp.gt.f32.partialorder %v829, -5e+29
    %vm848 = vcmp.gt.f32.partialorder %v831, -5e+29
    %vm849 = vcmp.gt.f32.partialorder %v833, -5e+29
    %v850 = vsel %vm732, %v608, 1e+30
    %v851 = vsel %vm732, %v609, 1e+30
    %v852 = vsel %vm732, %v610, 1e+30
    %v853 = vsel %vm732, %v611, 1e+30
    %v854 = vsel %vm732, %v612, 1e+30
    %v855 = vsel %vm732, %v613, 1e+30
    %v856 = vsel %vm732, %v614, 1e+30
    %v857 = vsel %vm732, %v615, 1e+30
    %v858 = vsel %vm732, %v616, 1e+30
    %v859 = vsel %vm732, %v617, 1e+30
    %v860 = vsel %vm732, %v618, 1e+30
    %v861 = vsel %vm732, %v619, 1e+30
    %v862 = vsel %vm732, %v620, 1e+30
    %v863 = vsel %vm732, %v621, 1e+30
    %v864 = vsel %vm732, %v622, 1e+30
    %v865 = vsel %vm732, %v623, 1e+30
    %866 = vmin.xlane.f32.xlu0 %v850
    %v867 = vpop.xlane.xlu0 %866
    %868 = vmin.xlane.f32.xlu0 %v851
    %v869 = vpop.xlane.xlu0 %868
    %870 = vmin.xlane.f32.xlu0 %v852
    %v871 = vpop.xlane.xlu0 %870
    %872 = vmin.xlane.f32.xlu0 %v853
    %v873 = vpop.xlane.xlu0 %872
    %874 = vmin.xlane.f32.xlu0 %v854
    %v875 = vpop.xlane.xlu0 %874
    %876 = vmin.xlane.f32.xlu0 %v855
    %v877 = vpop.xlane.xlu0 %876
    %878 = vmin.xlane.f32.xlu0 %v856
    %v879 = vpop.xlane.xlu0 %878
    %880 = vmin.xlane.f32.xlu0 %v857
    %v881 = vpop.xlane.xlu0 %880
    %882 = vmin.xlane.f32.xlu0 %v858
    %v883 = vpop.xlane.xlu0 %882
    %884 = vmin.xlane.f32.xlu0 %v859
    %v885 = vpop.xlane.xlu0 %884
    %886 = vmin.xlane.f32.xlu0 %v860
    %v887 = vpop.xlane.xlu0 %886
    %888 = vmin.xlane.f32.xlu0 %v861
    %v889 = vpop.xlane.xlu0 %888
    %890 = vmin.xlane.f32.xlu0 %v862
    %v891 = vpop.xlane.xlu0 %890
    %892 = vmin.xlane.f32.xlu0 %v863
    %v893 = vpop.xlane.xlu0 %892
    %894 = vmin.xlane.f32.xlu0 %v864
    %v895 = vpop.xlane.xlu0 %894
    %896 = vmin.xlane.f32.xlu0 %v865
    %v897 = vpop.xlane.xlu0 %896
    %v898 = vsel %vm834, %v803, %v867
    %v899 = vsel %vm835, %v805, %v869
    %v900 = vsel %vm836, %v807, %v871
    %v901 = vsel %vm837, %v809, %v873
    %v902 = vsel %vm838, %v811, %v875
    %v903 = vsel %vm839, %v813, %v877
    %v904 = vsel %vm840, %v815, %v879
    %v905 = vsel %vm841, %v817, %v881
    %v906 = vsel %vm842, %v819, %v883
    %v907 = vsel %vm843, %v821, %v885
    %v908 = vsel %vm844, %v823, %v887
    %v909 = vsel %vm845, %v825, %v889
    %v910 = vsel %vm846, %v827, %v891
    %v911 = vsel %vm847, %v829, %v893
    %v912 = vsel %vm848, %v831, %v895
    %v913 = vsel %vm849, %v833, %v897
    %vm914 = vcmask 7168
    %915 = vst.msk [vmem:[#allocation2] sm:$0xff] %vm914, 0.0
    %916 = vst.msk [vmem:[#allocation2 + $0x8] sm:$0xff] %vm914, 0.0
    %917 = vst.msk [vmem:[#allocation2 + $0x10] sm:$0xff] %vm914, 0.0
    %918 = vst.msk [vmem:[#allocation2 + $0x18] sm:$0xff] %vm914, 0.0
    %919 = vst.msk [vmem:[#allocation2 + $0x20] sm:$0xff] %vm914, 0.0
    %920 = vst.msk [vmem:[#allocation2 + $0x28] sm:$0xff] %vm914, 0.0
    %921 = vst.msk [vmem:[#allocation2 + $0x30] sm:$0xff] %vm914, 0.0
    %922 = vst.msk [vmem:[#allocation2 + $0x38] sm:$0xff] %vm914, 0.0
    %923 = vst.msk [vmem:[#allocation2 + $0x40] sm:$0xff] %vm914, 0.0
    %924 = vst.msk [vmem:[#allocation2 + $0x48] sm:$0xff] %vm914, 0.0
    %925 = vst.msk [vmem:[#allocation2 + $0x50] sm:$0xff] %vm914, 0.0
    %926 = vst.msk [vmem:[#allocation2 + $0x58] sm:$0xff] %vm914, 0.0
    %927 = vst.msk [vmem:[#allocation2 + $0x60] sm:$0xff] %vm914, 0.0
    %928 = vst.msk [vmem:[#allocation2 + $0x68] sm:$0xff] %vm914, 0.0
    %929 = vst.msk [vmem:[#allocation2 + $0x70] sm:$0xff] %vm914, 0.0
    %930 = vst.msk [vmem:[#allocation2 + $0x78] sm:$0xff] %vm914, 0.0
    loop: start=0, step=1, limit=128
    $region30: #{tpu_custom_call.1} parent=1 // loop_pre_header
      _
    $region31: #{tpu_custom_call.1} parent=1 // loop_header
      %s932 = sphi 0, %s936
      %p933 = scmp.ge.s32.totalorder %s932, 128
    $region32: #{tpu_custom_call.1} parent=1 // loop_header_branch
      %935 = sbr.rel (%p933) target = $region36
    $region33: #{tpu_custom_call.1} parent=1 // loop_body
      %s937 = sshra.s32 %s932, 7
      %s938 = sand.u32 %s932, 127
      %s939 = sadd.s32 %s937, 0
      %s940 = smul.u32 %s939, 128
      %s941 = sshra.s32 %s932, 7
      %s942 = sand.u32 %s932, 127
      %s943 = sadd.s32 %s940, %s942
      %s944 = sld [smem:[#allocation4 + %s943]]
      %p945 = scmp.gt.s32.totalorder %s944, 0
      // Predicated region
      $region37: #{tpu_custom_call.1} parent=33 // pred_check
        %p946 = pneg %p945
      $region38: #{tpu_custom_call.1} parent=33 // pred_check_branch
        %948 = sbr.rel (%p946) target = $region40
      $region39: #{tpu_custom_call.1} parent=33 // pred_region
        %s949 = sld [smem:[#allocation5 + %s932]]
        %v950 = vstv %s949
        %vm951 = vcmp.eq.s32.totalorder %v624, %v950
        %vm952 = vcmp.eq.s32.totalorder %v625, %v950
        %vm953 = vcmp.eq.s32.totalorder %v626, %v950
        %vm954 = vcmp.eq.s32.totalorder %v627, %v950
        %vm955 = vcmp.eq.s32.totalorder %v628, %v950
        %vm956 = vcmp.eq.s32.totalorder %v629, %v950
        %vm957 = vcmp.eq.s32.totalorder %v630, %v950
        %vm958 = vcmp.eq.s32.totalorder %v631, %v950
        %vm959 = vcmp.eq.s32.totalorder %v632, %v950
        %vm960 = vcmp.eq.s32.totalorder %v633, %v950
        %vm961 = vcmp.eq.s32.totalorder %v634, %v950
        %vm962 = vcmp.eq.s32.totalorder %v635, %v950
        %vm963 = vcmp.eq.s32.totalorder %v636, %v950
        %vm964 = vcmp.eq.s32.totalorder %v637, %v950
        %vm965 = vcmp.eq.s32.totalorder %v638, %v950
        %vm966 = vcmp.eq.s32.totalorder %v639, %v950
        %v967 = vstv %s932
        %vm968 = vcmp.ne.s32.totalorder %v770, %v967
        %vm969 = vcmp.ne.s32.totalorder %v771, %v967
        %vm970 = vcmp.ne.s32.totalorder %v772, %v967
        %vm971 = vcmp.ne.s32.totalorder %v773, %v967
        %vm972 = vcmp.ne.s32.totalorder %v774, %v967
        %vm973 = vcmp.ne.s32.totalorder %v775, %v967
        %vm974 = vcmp.ne.s32.totalorder %v776, %v967
        %vm975 = vcmp.ne.s32.totalorder %v777, %v967
        %vm976 = vcmp.ne.s32.totalorder %v778, %v967
        %vm977 = vcmp.ne.s32.totalorder %v779, %v967
        %vm978 = vcmp.ne.s32.totalorder %v780, %v967
        %vm979 = vcmp.ne.s32.totalorder %v781, %v967
        %vm980 = vcmp.ne.s32.totalorder %v782, %v967
        %vm981 = vcmp.ne.s32.totalorder %v783, %v967
        %vm982 = vcmp.ne.s32.totalorder %v784, %v967
        %vm983 = vcmp.ne.s32.totalorder %v785, %v967
        %vm984 = vmand %vm951, %vm968
        %vm985 = vmand %vm952, %vm969
        %vm986 = vmand %vm953, %vm970
        %vm987 = vmand %vm954, %vm971
        %vm988 = vmand %vm955, %vm972
        %vm989 = vmand %vm956, %vm973
        %vm990 = vmand %vm957, %vm974
        %vm991 = vmand %vm958, %vm975
        %vm992 = vmand %vm959, %vm976
        %vm993 = vmand %vm960, %vm977
        %vm994 = vmand %vm961, %vm978
        %vm995 = vmand %vm962, %vm979
        %vm996 = vmand %vm963, %vm980
        %vm997 = vmand %vm964, %vm981
        %vm998 = vmand %vm965, %vm982
        %vm999 = vmand %vm966, %vm983
        %vm1000 = vcmp.eq.s32.totalorder %v750, %v967
        %v1001 = vsel %vm1000, 1, 0
        %vm1002 = vcmp.eq.s32.totalorder %v1001, 1
        %v1003 = vsel %vm1002, %v608, -1e+30
        %v1004 = vsel %vm1002, %v609, -1e+30
        %v1005 = vsel %vm1002, %v610, -1e+30
        %v1006 = vsel %vm1002, %v611, -1e+30
        %v1007 = vsel %vm1002, %v612, -1e+30
        %v1008 = vsel %vm1002, %v613, -1e+30
        %v1009 = vsel %vm1002, %v614, -1e+30
        %v1010 = vsel %vm1002, %v615, -1e+30
        %v1011 = vsel %vm1002, %v616, -1e+30
        %v1012 = vsel %vm1002, %v617, -1e+30
        %v1013 = vsel %vm1002, %v618, -1e+30
        %v1014 = vsel %vm1002, %v619, -1e+30
        %v1015 = vsel %vm1002, %v620, -1e+30
        %v1016 = vsel %vm1002, %v621, -1e+30
        %v1017 = vsel %vm1002, %v622, -1e+30
        %v1018 = vsel %vm1002, %v623, -1e+30
        %1019 = vmax.xlane.f32.xlu0 %v1003
        %v1020 = vpop.xlane.xlu0 %1019
        %1021 = vmax.xlane.f32.xlu0 %v1004
        %v1022 = vpop.xlane.xlu0 %1021
        %1023 = vmax.xlane.f32.xlu0 %v1005
        %v1024 = vpop.xlane.xlu0 %1023
        %1025 = vmax.xlane.f32.xlu0 %v1006
        %v1026 = vpop.xlane.xlu0 %1025
        %1027 = vmax.xlane.f32.xlu0 %v1007
        %v1028 = vpop.xlane.xlu0 %1027
        %1029 = vmax.xlane.f32.xlu0 %v1008
        %v1030 = vpop.xlane.xlu0 %1029
        %1031 = vmax.xlane.f32.xlu0 %v1009
        %v1032 = vpop.xlane.xlu0 %1031
        %1033 = vmax.xlane.f32.xlu0 %v1010
        %v1034 = vpop.xlane.xlu0 %1033
        %1035 = vmax.xlane.f32.xlu0 %v1011
        %v1036 = vpop.xlane.xlu0 %1035
        %1037 = vmax.xlane.f32.xlu0 %v1012
        %v1038 = vpop.xlane.xlu0 %1037
        %1039 = vmax.xlane.f32.xlu0 %v1013
        %v1040 = vpop.xlane.xlu0 %1039
        %1041 = vmax.xlane.f32.xlu0 %v1014
        %v1042 = vpop.xlane.xlu0 %1041
        %1043 = vmax.xlane.f32.xlu0 %v1015
        %v1044 = vpop.xlane.xlu0 %1043
        %1045 = vmax.xlane.f32.xlu0 %v1016
        %v1046 = vpop.xlane.xlu0 %1045
        %1047 = vmax.xlane.f32.xlu0 %v1017
        %v1048 = vpop.xlane.xlu0 %1047
        %1049 = vmax.xlane.f32.xlu0 %v1018
        %v1050 = vpop.xlane.xlu0 %1049
        %vm1051 = vcmp.gt.f32.partialorder %v608, %v1020
        %vm1052 = vcmp.gt.f32.partialorder %v609, %v1022
        %vm1053 = vcmp.gt.f32.partialorder %v610, %v1024
        %vm1054 = vcmp.gt.f32.partialorder %v611, %v1026
        %vm1055 = vcmp.gt.f32.partialorder %v612, %v1028
        %vm1056 = vcmp.gt.f32.partialorder %v613, %v1030
        %vm1057 = vcmp.gt.f32.partialorder %v614, %v1032
        %vm1058 = vcmp.gt.f32.partialorder %v615, %v1034
        %vm1059 = vcmp.gt.f32.partialorder %v616, %v1036
        %vm1060 = vcmp.gt.f32.partialorder %v617, %v1038
        %vm1061 = vcmp.gt.f32.partialorder %v618, %v1040
        %vm1062 = vcmp.gt.f32.partialorder %v619, %v1042
        %vm1063 = vcmp.gt.f32.partialorder %v620, %v1044
        %vm1064 = vcmp.gt.f32.partialorder %v621, %v1046
        %vm1065 = vcmp.gt.f32.partialorder %v622, %v1048
        %vm1066 = vcmp.gt.f32.partialorder %v623, %v1050
        %vm1067 = vmand %vm733, %vm1051
        %vm1068 = vmand %vm734, %vm1052
        %vm1069 = vmand %vm735, %vm1053
        %vm1070 = vmand %vm736, %vm1054
        %vm1071 = vmand %vm737, %vm1055
        %vm1072 = vmand %vm738, %vm1056
        %vm1073 = vmand %vm739, %vm1057
        %vm1074 = vmand %vm740, %vm1058
        %vm1075 = vmand %vm741, %vm1059
        %vm1076 = vmand %vm742, %vm1060
        %vm1077 = vmand %vm743, %vm1061
        %vm1078 = vmand %vm744, %vm1062
        %vm1079 = vmand %vm745, %vm1063
        %vm1080 = vmand %vm746, %vm1064
        %vm1081 = vmand %vm747, %vm1065
        %vm1082 = vmand %vm748, %vm1066
        %v1083 = vsel %vm1067, %v608, 1e+30
        %v1084 = vsel %vm1068, %v609, 1e+30
        %v1085 = vsel %vm1069, %v610, 1e+30
        %v1086 = vsel %vm1070, %v611, 1e+30
        %v1087 = vsel %vm1071, %v612, 1e+30
        %v1088 = vsel %vm1072, %v613, 1e+30
        %v1089 = vsel %vm1073, %v614, 1e+30
        %v1090 = vsel %vm1074, %v615, 1e+30
        %v1091 = vsel %vm1075, %v616, 1e+30
        %v1092 = vsel %vm1076, %v617, 1e+30
        %v1093 = vsel %vm1077, %v618, 1e+30
        %v1094 = vsel %vm1078, %v619, 1e+30
        %v1095 = vsel %vm1079, %v620, 1e+30
        %v1096 = vsel %vm1080, %v621, 1e+30
        %v1097 = vsel %vm1081, %v622, 1e+30
        %v1098 = vsel %vm1082, %v623, 1e+30
        %1099 = vmin.xlane.f32.xlu0 %v1083
        %v1100 = vpop.xlane.xlu0 %1099
        %1101 = vmin.xlane.f32.xlu0 %v1084
        %v1102 = vpop.xlane.xlu0 %1101
        %1103 = vmin.xlane.f32.xlu0 %v1085
        %v1104 = vpop.xlane.xlu0 %1103
        %1105 = vmin.xlane.f32.xlu0 %v1086
        %v1106 = vpop.xlane.xlu0 %1105
        %1107 = vmin.xlane.f32.xlu0 %v1087
        %v1108 = vpop.xlane.xlu0 %1107
        %1109 = vmin.xlane.f32.xlu0 %v1088
        %v1110 = vpop.xlane.xlu0 %1109
        %1111 = vmin.xlane.f32.xlu0 %v1089
        %v1112 = vpop.xlane.xlu0 %1111
        %1113 = vmin.xlane.f32.xlu0 %v1090
        %v1114 = vpop.xlane.xlu0 %1113
        %1115 = vmin.xlane.f32.xlu0 %v1091
        %v1116 = vpop.xlane.xlu0 %1115
        %1117 = vmin.xlane.f32.xlu0 %v1092
        %v1118 = vpop.xlane.xlu0 %1117
        %1119 = vmin.xlane.f32.xlu0 %v1093
        %v1120 = vpop.xlane.xlu0 %1119
        %1121 = vmin.xlane.f32.xlu0 %v1094
        %v1122 = vpop.xlane.xlu0 %1121
        %1123 = vmin.xlane.f32.xlu0 %v1095
        %v1124 = vpop.xlane.xlu0 %1123
        %1125 = vmin.xlane.f32.xlu0 %v1096
        %v1126 = vpop.xlane.xlu0 %1125
        %1127 = vmin.xlane.f32.xlu0 %v1097
        %v1128 = vpop.xlane.xlu0 %1127
        %1129 = vmin.xlane.f32.xlu0 %v1098
        %v1130 = vpop.xlane.xlu0 %1129
        %vm1131 = vcmp.lt.f32.partialorder %v1100, 5e+29
        %vm1132 = vcmp.lt.f32.partialorder %v1102, 5e+29
        %vm1133 = vcmp.lt.f32.partialorder %v1104, 5e+29
        %vm1134 = vcmp.lt.f32.partialorder %v1106, 5e+29
        %vm1135 = vcmp.lt.f32.partialorder %v1108, 5e+29
        %vm1136 = vcmp.lt.f32.partialorder %v1110, 5e+29
        %vm1137 = vcmp.lt.f32.partialorder %v1112, 5e+29
        %vm1138 = vcmp.lt.f32.partialorder %v1114, 5e+29
        %vm1139 = vcmp.lt.f32.partialorder %v1116, 5e+29
        %vm1140 = vcmp.lt.f32.partialorder %v1118, 5e+29
        %vm1141 = vcmp.lt.f32.partialorder %v1120, 5e+29
        %vm1142 = vcmp.lt.f32.partialorder %v1122, 5e+29
        %vm1143 = vcmp.lt.f32.partialorder %v1124, 5e+29
        %vm1144 = vcmp.lt.f32.partialorder %v1126, 5e+29
        %vm1145 = vcmp.lt.f32.partialorder %v1128, 5e+29
        %vm1146 = vcmp.lt.f32.partialorder %v1130, 5e+29
        %v1147 = vsel %vm1131, %v1100, %v898
        %v1148 = vsel %vm1132, %v1102, %v899
        %v1149 = vsel %vm1133, %v1104, %v900
        %v1150 = vsel %vm1134, %v1106, %v901
        %v1151 = vsel %vm1135, %v1108, %v902
        %v1152 = vsel %vm1136, %v1110, %v903
        %v1153 = vsel %vm1137, %v1112, %v904
        %v1154 = vsel %vm1138, %v1114, %v905
        %v1155 = vsel %vm1139, %v1116, %v906
        %v1156 = vsel %vm1140, %v1118, %v907
        %v1157 = vsel %vm1141, %v1120, %v908
        %v1158 = vsel %vm1142, %v1122, %v909
        %v1159 = vsel %vm1143, %v1124, %v910
        %v1160 = vsel %vm1144, %v1126, %v911
        %v1161 = vsel %vm1145, %v1128, %v912
        %v1162 = vsel %vm1146, %v1130, %v913
        %v1163 = vsub.f32 %v1020, %v1147
        %v1164 = vsub.f32 %v1022, %v1148
        %v1165 = vsub.f32 %v1024, %v1149
        %v1166 = vsub.f32 %v1026, %v1150
        %v1167 = vsub.f32 %v1028, %v1151
        %v1168 = vsub.f32 %v1030, %v1152
        %v1169 = vsub.f32 %v1032, %v1153
        %v1170 = vsub.f32 %v1034, %v1154
        %v1171 = vsub.f32 %v1036, %v1155
        %v1172 = vsub.f32 %v1038, %v1156
        %v1173 = vsub.f32 %v1040, %v1157
        %v1174 = vsub.f32 %v1042, %v1158
        %v1175 = vsub.f32 %v1044, %v1159
        %v1176 = vsub.f32 %v1046, %v1160
        %v1177 = vsub.f32 %v1048, %v1161
        %v1178 = vsub.f32 %v1050, %v1162
        %v1179 = vadd.f32 %v1163, 1.0
        %v1180 = vadd.f32 %v1164, 1.0
        %v1181 = vadd.f32 %v1165, 1.0
        %v1182 = vadd.f32 %v1166, 1.0
        %v1183 = vadd.f32 %v1167, 1.0
        %v1184 = vadd.f32 %v1168, 1.0
        %v1185 = vadd.f32 %v1169, 1.0
        %v1186 = vadd.f32 %v1170, 1.0
        %v1187 = vadd.f32 %v1171, 1.0
        %v1188 = vadd.f32 %v1172, 1.0
        %v1189 = vadd.f32 %v1173, 1.0
        %v1190 = vadd.f32 %v1174, 1.0
        %v1191 = vadd.f32 %v1175, 1.0
        %v1192 = vadd.f32 %v1176, 1.0
        %v1193 = vadd.f32 %v1177, 1.0
        %v1194 = vadd.f32 %v1178, 1.0
        %v1195 = vmax.f32 %v1179, 0.0
        %v1196 = vmax.f32 %v1180, 0.0
        %v1197 = vmax.f32 %v1181, 0.0
        %v1198 = vmax.f32 %v1182, 0.0
        %v1199 = vmax.f32 %v1183, 0.0
        %v1200 = vmax.f32 %v1184, 0.0
        %v1201 = vmax.f32 %v1185, 0.0
        %v1202 = vmax.f32 %v1186, 0.0
        %v1203 = vmax.f32 %v1187, 0.0
        %v1204 = vmax.f32 %v1188, 0.0
        %v1205 = vmax.f32 %v1189, 0.0
        %v1206 = vmax.f32 %v1190, 0.0
        %v1207 = vmax.f32 %v1191, 0.0
        %v1208 = vmax.f32 %v1192, 0.0
        %v1209 = vmax.f32 %v1193, 0.0
        %v1210 = vmax.f32 %v1194, 0.0
        %v1211 = vsel %vm984, %v1195, 0.0
        %v1212 = vsel %vm985, %v1196, 0.0
        %v1213 = vsel %vm986, %v1197, 0.0
        %v1214 = vsel %vm987, %v1198, 0.0
        %v1215 = vsel %vm988, %v1199, 0.0
        %v1216 = vsel %vm989, %v1200, 0.0
        %v1217 = vsel %vm990, %v1201, 0.0
        %v1218 = vsel %vm991, %v1202, 0.0
        %v1219 = vsel %vm992, %v1203, 0.0
        %v1220 = vsel %vm993, %v1204, 0.0
        %v1221 = vsel %vm994, %v1205, 0.0
        %v1222 = vsel %vm995, %v1206, 0.0
        %v1223 = vsel %vm996, %v1207, 0.0
        %v1224 = vsel %vm997, %v1208, 0.0
        %v1225 = vsel %vm998, %v1209, 0.0
        %v1226 = vsel %vm999, %v1210, 0.0
        %v1227 = vld [vmem:[#allocation2] sm:$0xff]
        %v1228 = vld [vmem:[#allocation2 + $0x8] sm:$0xff]
        %v1229 = vld [vmem:[#allocation2 + $0x10] sm:$0xff]
        %v1230 = vld [vmem:[#allocation2 + $0x18] sm:$0xff]
        %v1231 = vld [vmem:[#allocation2 + $0x20] sm:$0xff]
        %v1232 = vld [vmem:[#allocation2 + $0x28] sm:$0xff]
        %v1233 = vld [vmem:[#allocation2 + $0x30] sm:$0xff]
        %v1234 = vld [vmem:[#allocation2 + $0x38] sm:$0xff]
        %v1235 = vld [vmem:[#allocation2 + $0x40] sm:$0xff]
        %v1236 = vld [vmem:[#allocation2 + $0x48] sm:$0xff]
        %v1237 = vld [vmem:[#allocation2 + $0x50] sm:$0xff]
        %v1238 = vld [vmem:[#allocation2 + $0x58] sm:$0xff]
        %v1239 = vld [vmem:[#allocation2 + $0x60] sm:$0xff]
        %v1240 = vld [vmem:[#allocation2 + $0x68] sm:$0xff]
        %v1241 = vld [vmem:[#allocation2 + $0x70] sm:$0xff]
        %v1242 = vld [vmem:[#allocation2 + $0x78] sm:$0xff]
        %v1243 = vadd.f32 %v1227, %v1211
        %v1244 = vadd.f32 %v1228, %v1212
        %v1245 = vadd.f32 %v1229, %v1213
        %v1246 = vadd.f32 %v1230, %v1214
        %v1247 = vadd.f32 %v1231, %v1215
        %v1248 = vadd.f32 %v1232, %v1216
        %v1249 = vadd.f32 %v1233, %v1217
        %v1250 = vadd.f32 %v1234, %v1218
        %v1251 = vadd.f32 %v1235, %v1219
        %v1252 = vadd.f32 %v1236, %v1220
        %v1253 = vadd.f32 %v1237, %v1221
        %v1254 = vadd.f32 %v1238, %v1222
        %v1255 = vadd.f32 %v1239, %v1223
        %v1256 = vadd.f32 %v1240, %v1224
        %v1257 = vadd.f32 %v1241, %v1225
        %v1258 = vadd.f32 %v1242, %v1226
        %1259 = vst.msk [vmem:[#allocation2] sm:$0xff] %vm914, %v1243
        %1260 = vst.msk [vmem:[#allocation2 + $0x8] sm:$0xff] %vm914, %v1244
        %1261 = vst.msk [vmem:[#allocation2 + $0x10] sm:$0xff] %vm914, %v1245
        %1262 = vst.msk [vmem:[#allocation2 + $0x18] sm:$0xff] %vm914, %v1246
        %1263 = vst.msk [vmem:[#allocation2 + $0x20] sm:$0xff] %vm914, %v1247
        %1264 = vst.msk [vmem:[#allocation2 + $0x28] sm:$0xff] %vm914, %v1248
        %1265 = vst.msk [vmem:[#allocation2 + $0x30] sm:$0xff] %vm914, %v1249
        %1266 = vst.msk [vmem:[#allocation2 + $0x38] sm:$0xff] %vm914, %v1250
        %1267 = vst.msk [vmem:[#allocation2 + $0x40] sm:$0xff] %vm914, %v1251
        %1268 = vst.msk [vmem:[#allocation2 + $0x48] sm:$0xff] %vm914, %v1252
        %1269 = vst.msk [vmem:[#allocation2 + $0x50] sm:$0xff] %vm914, %v1253
        %1270 = vst.msk [vmem:[#allocation2 + $0x58] sm:$0xff] %vm914, %v1254
        %1271 = vst.msk [vmem:[#allocation2 + $0x60] sm:$0xff] %vm914, %v1255
        %1272 = vst.msk [vmem:[#allocation2 + $0x68] sm:$0xff] %vm914, %v1256
        %1273 = vst.msk [vmem:[#allocation2 + $0x70] sm:$0xff] %vm914, %v1257
        %1274 = vst.msk [vmem:[#allocation2 + $0x78] sm:$0xff] %vm914, %v1258
      $region40: #{tpu_custom_call.1} parent=33 // pred_fallthru
        _
    $region34: #{tpu_custom_call.1} parent=1 // loop_footer
      %s936 = sadd.s32 1, %s932
    $region35: #{tpu_custom_call.1} parent=1 // loop_footer_branch
      %931 = sbr.rel target = $region31
    $region36: #{tpu_custom_call.1} parent=1 // loop_exit
      _
    %v1275 = vld [vmem:[#allocation2] sm:$0xff]
    %v1276 = vld [vmem:[#allocation2 + $0x8] sm:$0xff]
    %v1277 = vld [vmem:[#allocation2 + $0x10] sm:$0xff]
    %v1278 = vld [vmem:[#allocation2 + $0x18] sm:$0xff]
    %v1279 = vld [vmem:[#allocation2 + $0x20] sm:$0xff]
    %v1280 = vld [vmem:[#allocation2 + $0x28] sm:$0xff]
    %v1281 = vld [vmem:[#allocation2 + $0x30] sm:$0xff]
    %v1282 = vld [vmem:[#allocation2 + $0x38] sm:$0xff]
    %v1283 = vld [vmem:[#allocation2 + $0x40] sm:$0xff]
    %v1284 = vld [vmem:[#allocation2 + $0x48] sm:$0xff]
    %v1285 = vld [vmem:[#allocation2 + $0x50] sm:$0xff]
    %v1286 = vld [vmem:[#allocation2 + $0x58] sm:$0xff]
    %v1287 = vld [vmem:[#allocation2 + $0x60] sm:$0xff]
    %v1288 = vld [vmem:[#allocation2 + $0x68] sm:$0xff]
    %v1289 = vld [vmem:[#allocation2 + $0x70] sm:$0xff]
    %v1290 = vld [vmem:[#allocation2 + $0x78] sm:$0xff]
    %v1291 = vsel %vm914, %v1275, 0.0
    %v1292 = vsel %vm914, %v1276, 0.0
    %v1293 = vadd.f32 %v1291, %v1292
    %v1294 = vsel %vm914, %v1277, 0.0
    %v1295 = vadd.f32 %v1293, %v1294
    %v1296 = vsel %vm914, %v1278, 0.0
    %v1297 = vadd.f32 %v1295, %v1296
    %v1298 = vsel %vm914, %v1279, 0.0
    %v1299 = vadd.f32 %v1297, %v1298
    %v1300 = vsel %vm914, %v1280, 0.0
    %v1301 = vadd.f32 %v1299, %v1300
    %v1302 = vsel %vm914, %v1281, 0.0
    %v1303 = vadd.f32 %v1301, %v1302
    %v1304 = vsel %vm914, %v1282, 0.0
    %v1305 = vadd.f32 %v1303, %v1304
    %v1306 = vsel %vm914, %v1283, 0.0
    %v1307 = vadd.f32 %v1305, %v1306
    %v1308 = vsel %vm914, %v1284, 0.0
    %v1309 = vadd.f32 %v1307, %v1308
    %v1310 = vsel %vm914, %v1285, 0.0
    %v1311 = vadd.f32 %v1309, %v1310
    %v1312 = vsel %vm914, %v1286, 0.0
    %v1313 = vadd.f32 %v1311, %v1312
    %v1314 = vsel %vm914, %v1287, 0.0
    %v1315 = vadd.f32 %v1313, %v1314
    %v1316 = vsel %vm914, %v1288, 0.0
    %v1317 = vadd.f32 %v1315, %v1316
    %v1318 = vsel %vm914, %v1289, 0.0
    %v1319 = vadd.f32 %v1317, %v1318
    %v1320 = vsel %vm914, %v1290, 0.0
    %v1321 = vadd.f32 %v1319, %v1320
    %1322 = vadd.xlane.f32.xlu0 %v1321
    %v1323 = vpop.xlane.xlu0 %1322
    %v1324 = vrot.slane %v1323, 4
    %v1325 = vadd.f32 %v1323, %v1324
    %v1326 = vrot.slane %v1325, 2
    %v1327 = vadd.f32 %v1325, %v1326
    %v1328 = vrot.slane %v1327, 1
    %v1329 = vadd.f32 %v1327, %v1328
    %s1330 = vtos %v1329
    %v1331 = vstv %s1330
    %vm1332 = vcmask 0
    %1333 = vst.msk [vmem:[#allocation6] sm:$0x1] %vm1332, %v1331
    // Predicated region
    $region41: #{tpu_custom_call.1} parent=1 // pred_check
      _
    $region42: #{tpu_custom_call.1} parent=1 // pred_check_branch
      %1335 = sbr.rel (0) target = $region44
    $region43: #{tpu_custom_call.1} parent=1 // pred_region
      %s1337 = ssub.s32 16, 16
      %1338 = vsyncadd [#allocation7], %s1337
      %s1340 = sshll.u32 [#allocation6], 4
      %s1341 = int_to_ptr.vmem [resolvable:$true] %s1340
      %1343 = dma.vmem_to_hbm [thread:$0]  %s1341, 16, %s9, [#allocation7]
    $region44: #{tpu_custom_call.1} parent=1 // pred_fallthru
      _
    // Predicated region
    $region45: #{tpu_custom_call.1} parent=1 // pred_check
      _
    $region46: #{tpu_custom_call.1} parent=1 // pred_check_branch
      %1345 = sbr.rel (0) target = $region48
    $region47: #{tpu_custom_call.1} parent=1 // pred_region
      %1346 = dma.done [#allocation7], 16
    $region48: #{tpu_custom_call.1} parent=1 // pred_fallthru
      _
    %1347 = vsyncpa [#allocation7], 1

</llo_original>
